<compile_context>
chip_gen: v5e
topology: v5e:2x2
jax: 0.10.0
libtpu: 0.0.40
codegen_flags: <defaults>
</compile_context>

<pallas_src>
import functools

import jax
import jax.numpy as jnp
from jax.experimental import pallas as pl
from jax.experimental.pallas import tpu as pltpu


def _round_up(x, m):
    return ((x + m - 1) // m) * m


# ----------------------------------------------------------------------------
# Pallas kernel: DualNetwork.forward(c) hot path.
#   grid = (B, N_tiles); N_tiles is the reduction axis (output resident).
# ----------------------------------------------------------------------------
def dual_objective_kernel(c_ref, x_ref, w1_ref, w2_ref, b1_ref, b2_ref,
                          d_ref, zl_i_ref, out_ref, nu2_ref,
                          *, epsilon, mm_dtype):
    nj = pl.program_id(1)

    @pl.when(nj == 0)
    def _init():
        c = c_ref[...]                                         # (Kp, OUTp)
        # nu1 = (-c) @ W2  (DualLinear2.T), nu2 = d * nu1 (DualReLU.T)
        nu1 = jnp.dot((-c).astype(mm_dtype), w2_ref[...].astype(mm_dtype),
                      preferred_element_type=jnp.float32)      # (Kp, Hp)
        nu2 = nu1 * d_ref[...]                                 # (1,Hp) row bcast
        nu2_ref[...] = nu2
        # Fused H-reduction: DualReLU.obj + DualLinear1.obj
        #   sum_h( relu(nu2)*zl*I - nu2*b1 )
        h_term = jnp.sum(jnp.maximum(nu2, 0.0) * zl_i_ref[...]
                         - nu2 * b1_ref[...], axis=-1)         # (Kp,)
        # DualLinear2 (last_layer) objective: -nu0.b2 = c.b2
        o_term = jnp.sum(c * b2_ref[...], axis=-1)             # (Kp,)
        out_ref[...] = (h_term + o_term)[None, :]              # (1, Kp)

    # Streamed N-tile: nu3_t = nu2 @ W1[:, tile]; fused InfBall reduction
    #   accumulate  sum_n( -nu3*x - eps*|nu3| )  into the resident output.
    nu3 = jnp.dot(nu2_ref[...].astype(mm_dtype), w1_ref[...].astype(mm_dtype),
                  preferred_element_type=jnp.float32)          # (Kp, TN)
    out_ref[...] += jnp.sum(-nu3 * x_ref[...] - epsilon * jnp.abs(nu3),
                            axis=-1)[None, :]


def dual_network_forward(c, X, w1, w2, b1, b2, d, zl_i, epsilon,
                         *, n_tile=512, mm_dtype=jnp.float32):
    """Pallas forward.  mm_dtype=jnp.bfloat16 enables bf16 MXU feeding on
    v6e/v7x (elementwise/objective math stays f32); default f32 preserves the
    reference semantics exactly."""
    B, K, OUT = c.shape
    H, N = w1.shape
    f32 = jnp.float32

    K_p = _round_up(K, 128)
    OUT_p = _round_up(OUT, 128)
    H_p = _round_up(H, 128)
    TN = min(_round_up(N, 128), _round_up(n_tile, 128))
    N_p = _round_up(N, TN)
    n_tiles = N_p // TN

    # Zero-pad to MXU/lane-friendly shapes.  Zero padding is exact: padded
    # lanes contribute 0 through every matmul / abs / relu / sum term.
    c_p = jnp.zeros((B, K_p, OUT_p), f32).at[:, :K, :OUT].set(c.astype(f32))
    x_p = jnp.zeros((B, 1, N_p), f32).at[:, 0, :N].set(X.astype(f32))
    w1_p = jnp.zeros((H_p, N_p), f32).at[:H, :N].set(w1.astype(f32))
    w2_p = jnp.zeros((OUT_p, H_p), f32).at[:OUT, :H].set(w2.astype(f32))
    b1_p = jnp.zeros((1, H_p), f32).at[0, :H].set(b1.astype(f32))
    b2_p = jnp.zeros((1, OUT_p), f32).at[0, :OUT].set(b2.astype(f32))
    d_p = jnp.zeros((B, 1, H_p), f32).at[:, 0, :H].set(d.astype(f32))
    zl_p = jnp.zeros((B, 1, H_p), f32).at[:, 0, :H].set(zl_i.astype(f32))

    kernel = functools.partial(dual_objective_kernel,
                               epsilon=float(epsilon), mm_dtype=mm_dtype)

    in_specs = [
        pl.BlockSpec((None, K_p, OUT_p), lambda b, nj: (b, 0, 0)),   # c   (per batch)
        pl.BlockSpec((None, 1, TN),      lambda b, nj: (b, 0, nj)),  # x   (per batch, N-tiled)
        pl.BlockSpec((H_p, TN),          lambda b, nj: (0, nj)),     # W1  (N-tiled)
        pl.BlockSpec((OUT_p, H_p),       lambda b, nj: (0, 0)),      # W2  (resident)
        pl.BlockSpec((1, H_p),           lambda b, nj: (0, 0)),      # b1  (resident)
        pl.BlockSpec((1, OUT_p),         lambda b, nj: (0, 0)),      # b2  (resident)
        pl.BlockSpec((None, 1, H_p),     lambda b, nj: (b, 0, 0)),   # d   (per batch)
        pl.BlockSpec((None, 1, H_p),     lambda b, nj: (b, 0, 0)),   # zl*I(per batch)
    ]
    # Lane-dense output block (1, K_p); resident across the N reduction axis.
    out_spec = pl.BlockSpec((None, 1, K_p), lambda b, nj: (b, 0, 0))

    # Explicit VMEM budget: double-buffered blocks + nu2 scratch, with headroom,
    # capped below the 32 MiB scoped default so it is safe on v5e/v6e/v7x.
    block_elems = (K_p * OUT_p + TN + H_p * TN + OUT_p * H_p
                   + 3 * H_p + OUT_p + K_p)
    vmem_bytes = 4 * (2 * block_elems + K_p * H_p)
    vmem_limit = int(min(max(2 * vmem_bytes, 8 << 20), 30 << 20))

    cost = pl.CostEstimate(
        flops=2 * B * K_p * (OUT_p * H_p + H_p * N_p),
        transcendentals=0,
        bytes_accessed=4 * (c_p.size + x_p.size + w1_p.size + w2_p.size
                            + b1_p.size + b2_p.size + d_p.size + zl_p.size
                            + B * K_p),
    )

    out_p = pl.pallas_call(
        kernel,
        out_shape=jax.ShapeDtypeStruct((B, 1, K_p), f32),
        grid=(B, n_tiles),
        in_specs=in_specs,
        out_specs=out_spec,
        scratch_shapes=[pltpu.VMEM((K_p, H_p), jnp.float32)],   # nu2 (reused per N-tile)
        compiler_params=pltpu.CompilerParams(
            dimension_semantics=("parallel", "arbitrary"),
            vmem_limit_bytes=vmem_limit),
        cost_estimate=cost,
    )(c_p, x_p, w1_p, w2_p, b1_p, b2_p, d_p, zl_p)

    return out_p[:, 0, :K]


# ----------------------------------------------------------------------------
# DualNetwork.__init__ equivalent (plain JAX glue): pre-activation bounds,
# ReLU slopes d, and zl*I for the ambiguous-neuron term.
# ----------------------------------------------------------------------------
def build_dual_network(X, w1, b1, epsilon):
    zhat = X @ w1.T + b1[None, :]                    # (B, H)
    l1 = jnp.abs(w1).sum(axis=1)                     # (H,) row-L1 of W1
    zl = zhat - epsilon * l1[None, :]
    zu = zhat + epsilon * l1[None, :]
    I = (zu > 0) & (zl < 0)                          # ambiguous neurons
    d = (zl >= 0).astype(X.dtype) + jnp.where(I, zu / (zu - zl),
                                              jnp.zeros_like(zu))
    zl_i = zl * I.astype(X.dtype)                    # zl masked to I
    return d, zl_i


# ----------------------------------------------------------------------------
# Pure-JAX reference (numerical sanity check of the kernel).
# ----------------------------------------------------------------------------
def reference_forward(c, X, w1, b1, w2, b2, d, zl_i, epsilon):
    nu1 = jnp.einsum('bko,oh->bkh', -c, w2)
    nu2 = nu1 * d[:, None, :]
    nu3 = jnp.einsum('bkh,hn->bkn', nu2, w1)
    o0 = -jnp.einsum('bkn,bn->bk', nu3, X) - epsilon * jnp.abs(nu3).sum(-1)
    o1 = -jnp.einsum('bkh,h->bk', nu2, b1)
    o2 = (jnp.maximum(nu2, 0.0) * zl_i[:, None, :]).sum(-1)
    o3 = jnp.einsum('bko,o->bk', c, b2)
    return o0 + o1 + o2 + o3


if __name__ == "__main__":
    B, N, H, OUT, K = 2, 64, 32, 10, 10
    epsilon = 0.1

    key = jax.random.PRNGKey(0)
    k_x, k_c, k_w1, k_b1, k_w2, k_b2 = jax.random.split(key, 6)

    # Deterministic synthetic parameters (PyTorch Linear-style uniform init).
    X = jax.random.uniform(k_x, (B, N), jnp.float32)                 # minibatch
    c = jax.random.normal(k_c, (B, K, OUT), jnp.float32)             # objective vectors
    lim1 = 1.0 / jnp.sqrt(N)
    w1 = jax.random.uniform(k_w1, (H, N), jnp.float32, -lim1, lim1)  # Linear(N,H).weight
    b1 = jax.random.uniform(k_b1, (H,), jnp.float32, -lim1, lim1)
    lim2 = 1.0 / jnp.sqrt(H)
    w2 = jax.random.uniform(k_w2, (OUT, H), jnp.float32, -lim2, lim2)  # Linear(H,OUT).weight
    b2 = jax.random.uniform(k_b2, (OUT,), jnp.float32, -lim2, lim2)

    # __init__: build the dual network state.
    d, zl_i = build_dual_network(X, w1, b1, epsilon)

    # forward(c): Pallas kernel.
    out = dual_network_forward(c, X, w1, w2, b1, b2, d, zl_i, epsilon)
    out = jax.block_until_ready(out)

    # Sanity check against the pure-JAX reference.
    ref = jax.block_until_ready(
        reference_forward(c, X, w1, b1, w2, b2, d, zl_i, epsilon))
    assert out.shape == (B, K)
    assert jnp.allclose(out, ref, rtol=1e-2, atol=1e-2), (out, ref)

    print("KERNEL_OK")
</pallas_src>

<mosaic_0001>
module attributes {stable_mosaic.version = 11 : i64} {
  func.func @dual_objective_kernel(%arg0: i32, %arg1: i32, %arg2: memref<1x128x128xf32, #tpu.memory_space<vmem>>, %arg3: memref<1x1x128xf32, #tpu.memory_space<vmem>>, %arg4: memref<128x128xf32, #tpu.memory_space<vmem>>, %arg5: memref<128x128xf32, #tpu.memory_space<vmem>>, %arg6: memref<1x128xf32, #tpu.memory_space<vmem>>, %arg7: memref<1x128xf32, #tpu.memory_space<vmem>>, %arg8: memref<1x1x128xf32, #tpu.memory_space<vmem>>, %arg9: memref<1x1x128xf32, #tpu.memory_space<vmem>>, %arg10: memref<1x1x128xf32, #tpu.memory_space<vmem>>, %arg11: memref<128x128xf32, #tpu.memory_space<vmem>>) attributes {dimension_semantics = [#tpu.dimension_semantics<parallel>, #tpu.dimension_semantics<arbitrary>], iteration_bounds = array<i64: 2, 1>, scalar_prefetch = 0 : i64, scratch_operands = 1 : i64, tpu.core_type = #tpu.core_type<tc>, window_params = [{transform_indices = @transform_0, window_bounds = array<i64: 1, 128, 128>}, {transform_indices = @transform_1, window_bounds = array<i64: 1, 1, 128>}, {transform_indices = @transform_2, window_bounds = array<i64: 128, 128>}, {pipeline_mode = #tpu.pipeline_mode<synchronous>, transform_indices = @transform_3, window_bounds = array<i64: 128, 128>}, {pipeline_mode = #tpu.pipeline_mode<synchronous>, transform_indices = @transform_4, window_bounds = array<i64: 1, 128>}, {pipeline_mode = #tpu.pipeline_mode<synchronous>, transform_indices = @transform_5, window_bounds = array<i64: 1, 128>}, {transform_indices = @transform_6, window_bounds = array<i64: 1, 1, 128>}, {transform_indices = @transform_7, window_bounds = array<i64: 1, 1, 128>}, {transform_indices = @transform_8, window_bounds = array<i64: 1, 1, 128>}]} {
    %c0_i32 = arith.constant 0 : i32
    %0 = arith.cmpi eq, %arg1, %c0_i32 : i32
    %1 = arith.extui %0 : i1 to i32
    %c0_i32_0 = arith.constant 0 : i32
    %2 = arith.cmpi ne, %1, %c0_i32_0 : i32
    scf.if %2 {
      %c0_16 = arith.constant 0 : index
      %c0_17 = arith.constant 0 : index
      %c0_18 = arith.constant 0 : index
      %24 = vector.load %arg2[%c0_16, %c0_17, %c0_18] : memref<1x128x128xf32, #tpu.memory_space<vmem>>, vector<1x128x128xf32>
      %25 = vector.shape_cast %24 : vector<1x128x128xf32> to vector<128x128xf32>
      %cst_19 = arith.constant 0.000000e+00 : f32
      %26 = vector.broadcast %cst_19 : f32 to vector<128x128xf32>
      %27 = arith.subf %26, %25 : vector<128x128xf32>
      %c0_20 = arith.constant 0 : index
      %c0_21 = arith.constant 0 : index
      %28 = vector.load %arg5[%c0_20, %c0_21] : memref<128x128xf32, #tpu.memory_space<vmem>>, vector<128x128xf32>
      %cst_22 = arith.constant dense<0.000000e+00> : vector<128x128xf32>
      %29 = tpu.matmul %27, %28, %cst_22 {dimension_numbers = #tpu.dot_dimension_numbers<[1], [0], [0], [1], [0, 0, 1, 1], [], []>} : vector<128x128xf32>, vector<128x128xf32>, vector<128x128xf32> -> vector<128x128xf32>
      %c0_23 = arith.constant 0 : index
      %c0_24 = arith.constant 0 : index
      %c0_25 = arith.constant 0 : index
      %30 = vector.load %arg8[%c0_23, %c0_24, %c0_25] : memref<1x1x128xf32, #tpu.memory_space<vmem>>, vector<1x1x128xf32>
      %31 = vector.shape_cast %30 : vector<1x1x128xf32> to vector<1x128xf32>
      %32 = vector.broadcast %31 : vector<1x128xf32> to vector<128x128xf32>
      %33 = arith.mulf %29, %32 : vector<128x128xf32>
      %c0_26 = arith.constant 0 : index
      %c0_27 = arith.constant 0 : index
      %34 = vector.load %arg11[%c0_26, %c0_27] : memref<128x128xf32, #tpu.memory_space<vmem>>, vector<128x128xf32>
      tpu.vector_store %arg11[%c0_26, %c0_27], %33 {strides = array<i32>} : memref<128x128xf32, #tpu.memory_space<vmem>>, vector<128x128xf32>,
      %cst_28 = arith.constant 0.000000e+00 : f32
      %35 = vector.broadcast %cst_28 : f32 to vector<128x128xf32>
      %36 = arith.maximumf %33, %35 : vector<128x128xf32>
      %c0_29 = arith.constant 0 : index
      %c0_30 = arith.constant 0 : index
      %c0_31 = arith.constant 0 : index
      %37 = vector.load %arg9[%c0_29, %c0_30, %c0_31] : memref<1x1x128xf32, #tpu.memory_space<vmem>>, vector<1x1x128xf32>
      %38 = vector.shape_cast %37 : vector<1x1x128xf32> to vector<1x128xf32>
      %39 = vector.broadcast %38 : vector<1x128xf32> to vector<128x128xf32>
      %40 = arith.mulf %36, %39 : vector<128x128xf32>
      %c0_32 = arith.constant 0 : index
      %c0_33 = arith.constant 0 : index
      %41 = vector.load %arg6[%c0_32, %c0_33] : memref<1x128xf32, #tpu.memory_space<vmem>>, vector<1x128xf32>
      %42 = vector.broadcast %41 : vector<1x128xf32> to vector<128x128xf32>
      %43 = arith.mulf %33, %42 : vector<128x128xf32>
      %44 = arith.subf %40, %43 : vector<128x128xf32>
      %cst_34 = arith.constant dense<0.000000e+00> : vector<128xf32>
      %45 = vector.multi_reduction <add>, %44, %cst_34 [1] : vector<128x128xf32> to vector<128xf32>
      %c0_35 = arith.constant 0 : index
      %c0_36 = arith.constant 0 : index
      %46 = vector.load %arg7[%c0_35, %c0_36] : memref<1x128xf32, #tpu.memory_space<vmem>>, vector<1x128xf32>
      %47 = vector.broadcast %46 : vector<1x128xf32> to vector<128x128xf32>
      %48 = arith.mulf %25, %47 : vector<128x128xf32>
      %cst_37 = arith.constant dense<0.000000e+00> : vector<128xf32>
      %49 = vector.multi_reduction <add>, %48, %cst_37 [1] : vector<128x128xf32> to vector<128xf32>
      %50 = arith.addf %45, %49 : vector<128xf32>
      %51 = vector.shape_cast %50 : vector<128xf32> to vector<1x128xf32>
      %c0_38 = arith.constant 0 : index
      %c0_39 = arith.constant 0 : index
      %c0_40 = arith.constant 0 : index
      %52 = vector.load %arg10[%c0_38, %c0_39, %c0_40] : memref<1x1x128xf32, #tpu.memory_space<vmem>>, vector<1x1x128xf32>
      %53 = vector.shape_cast %52 : vector<1x1x128xf32> to vector<1x128xf32>
      %54 = vector.shape_cast %51 : vector<1x128xf32> to vector<1x1x128xf32>
      tpu.vector_store %arg10[%c0_38, %c0_39, %c0_40], %54 {strides = array<i32>} : memref<1x1x128xf32, #tpu.memory_space<vmem>>, vector<1x1x128xf32>,
    } else {
    }
    %c0 = arith.constant 0 : index
    %c0_1 = arith.constant 0 : index
    %3 = vector.load %arg11[%c0, %c0_1] : memref<128x128xf32, #tpu.memory_space<vmem>>, vector<128x128xf32>
    %c0_2 = arith.constant 0 : index
    %c0_3 = arith.constant 0 : index
    %4 = vector.load %arg4[%c0_2, %c0_3] : memref<128x128xf32, #tpu.memory_space<vmem>>, vector<128x128xf32>
    %cst = arith.constant dense<0.000000e+00> : vector<128x128xf32>
    %5 = tpu.matmul %3, %4, %cst {dimension_numbers = #tpu.dot_dimension_numbers<[1], [0], [0], [1], [0, 0, 1, 1], [], []>} : vector<128x128xf32>, vector<128x128xf32>, vector<128x128xf32> -> vector<128x128xf32>
    %c0_4 = arith.constant 0 : index
    %c0_5 = arith.constant 0 : index
    %c0_6 = arith.constant 0 : index
    %6 = vector.load %arg10[%c0_4, %c0_5, %c0_6] : memref<1x1x128xf32, #tpu.memory_space<vmem>>, vector<1x1x128xf32>
    %7 = vector.shape_cast %6 : vector<1x1x128xf32> to vector<1x128xf32>
    %cst_7 = arith.constant 0.000000e+00 : f32
    %8 = vector.broadcast %cst_7 : f32 to vector<128x128xf32>
    %9 = arith.subf %8, %5 : vector<128x128xf32>
    %c0_8 = arith.constant 0 : index
    %c0_9 = arith.constant 0 : index
    %c0_10 = arith.constant 0 : index
    %10 = vector.load %arg3[%c0_8, %c0_9, %c0_10] : memref<1x1x128xf32, #tpu.memory_space<vmem>>, vector<1x1x128xf32>
    %11 = vector.shape_cast %10 : vector<1x1x128xf32> to vector<1x128xf32>
    %12 = vector.broadcast %11 : vector<1x128xf32> to vector<128x128xf32>
    %13 = arith.mulf %9, %12 : vector<128x128xf32>
    %14 = math.absf %5 : vector<128x128xf32>
    %cst_11 = arith.constant 1.000000e-01 : f32
    %15 = vector.broadcast %cst_11 : f32 to vector<128x128xf32>
    %16 = arith.mulf %15, %14 : vector<128x128xf32>
    %17 = arith.subf %13, %16 : vector<128x128xf32>
    %cst_12 = arith.constant dense<0.000000e+00> : vector<128xf32>
    %18 = vector.multi_reduction <add>, %17, %cst_12 [1] : vector<128x128xf32> to vector<128xf32>
    %19 = vector.shape_cast %18 : vector<128xf32> to vector<1x128xf32>
    %20 = arith.addf %7, %19 : vector<1x128xf32>
    %c0_13 = arith.constant 0 : index
    %c0_14 = arith.constant 0 : index
    %c0_15 = arith.constant 0 : index
    %21 = vector.load %arg10[%c0_13, %c0_14, %c0_15] : memref<1x1x128xf32, #tpu.memory_space<vmem>>, vector<1x1x128xf32>
    %22 = vector.shape_cast %21 : vector<1x1x128xf32> to vector<1x128xf32>
    %23 = vector.shape_cast %20 : vector<1x128xf32> to vector<1x1x128xf32>
    tpu.vector_store %arg10[%c0_13, %c0_14, %c0_15], %23 {strides = array<i32>} : memref<1x1x128xf32, #tpu.memory_space<vmem>>, vector<1x1x128xf32>,
    return
  }
  func.func @transform_0(%arg0: i32, %arg1: i32) -> (i32, i32, i32) {
    %c0_i32 = arith.constant 0 : i32
    %c0_i32_0 = arith.constant 0 : i32
    %c0_i32_1 = arith.constant 0 : i32
    return %arg0, %c0_i32, %c0_i32_0 : i32, i32, i32
  }
  func.func @transform_1(%arg0: i32, %arg1: i32) -> (i32, i32, i32) {
    %c0_i32 = arith.constant 0 : i32
    %c0_i32_0 = arith.constant 0 : i32
    return %arg0, %c0_i32, %arg1 : i32, i32, i32
  }
  func.func @transform_2(%arg0: i32, %arg1: i32) -> (i32, i32) {
    %c0_i32 = arith.constant 0 : i32
    %c0_i32_0 = arith.constant 0 : i32
    return %c0_i32, %arg1 : i32, i32
  }
  func.func @transform_3(%arg0: i32, %arg1: i32) -> (i32, i32) {
    %c0_i32 = arith.constant 0 : i32
    %c0_i32_0 = arith.constant 0 : i32
    %c0_i32_1 = arith.constant 0 : i32
    return %c0_i32, %c0_i32_0 : i32, i32
  }
  func.func @transform_4(%arg0: i32, %arg1: i32) -> (i32, i32) {
    %c0_i32 = arith.constant 0 : i32
    %c0_i32_0 = arith.constant 0 : i32
    %c0_i32_1 = arith.constant 0 : i32
    return %c0_i32, %c0_i32_0 : i32, i32
  }
  func.func @transform_5(%arg0: i32, %arg1: i32) -> (i32, i32) {
    %c0_i32 = arith.constant 0 : i32
    %c0_i32_0 = arith.constant 0 : i32
    %c0_i32_1 = arith.constant 0 : i32
    return %c0_i32, %c0_i32_0 : i32, i32
  }
  func.func @transform_6(%arg0: i32, %arg1: i32) -> (i32, i32, i32) {
    %c0_i32 = arith.constant 0 : i32
    %c0_i32_0 = arith.constant 0 : i32
    %c0_i32_1 = arith.constant 0 : i32
    return %arg0, %c0_i32, %c0_i32_0 : i32, i32, i32
  }
  func.func @transform_7(%arg0: i32, %arg1: i32) -> (i32, i32, i32) {
    %c0_i32 = arith.constant 0 : i32
    %c0_i32_0 = arith.constant 0 : i32
    %c0_i32_1 = arith.constant 0 : i32
    return %arg0, %c0_i32, %c0_i32_0 : i32, i32, i32
  }
  func.func @transform_8(%arg0: i32, %arg1: i32) -> (i32, i32, i32) {
    %c0_i32 = arith.constant 0 : i32
    %c0_i32_0 = arith.constant 0 : i32
    %c0_i32_1 = arith.constant 0 : i32
    return %arg0, %c0_i32, %c0_i32_0 : i32, i32, i32
  }
}

</mosaic_0001>

<llo_original>
// kernel: tpu_custom_call.1
$region0: #{tpu_custom_call.1}
  #allocation0 [shape = 'u32[]', space=smem, size = 0x4, offset = 0x4, fixed_abs, tag = 'smem constant byte address 0x4 - core index']
  #allocation1 [shape = 'u32[72,128]{1,0:T(1,128)}', space=vmem, size = 0x9000, scoped, tag = 'internal scratch']
  #allocation2 [shape = 'f32[128,128]{1,0:T(8,128)}', space=vmem, size = 0x10000, scoped, tag = 'scratch operand']
  %s0 = inlined_call_operand.hbm [shape: f32[2,128,128], index: 0, kind: input, shape index: {}]
  %s1 = inlined_call_operand.hbm [shape: f32[2,1,128], index: 1, kind: input, shape index: {}]
  %s2 = inlined_call_operand.hbm [shape: f32[128,128], index: 2, kind: input, shape index: {}]
  %s3 = inlined_call_operand.hbm [shape: f32[128,128], index: 3, kind: input, shape index: {}]
  %s4 = inlined_call_operand.hbm [shape: f32[1,128], index: 4, kind: input, shape index: {}]
  %s5 = inlined_call_operand.hbm [shape: f32[1,128], index: 5, kind: input, shape index: {}]
  %s6 = inlined_call_operand.vmem [shape: f32[2,1,128], index: 6, kind: input, shape index: {}]
  %s7 = inlined_call_operand.vmem [shape: f32[2,1,128], index: 7, kind: input, shape index: {}]
  %s8 = inlined_call_operand.hbm [shape: f32[2,1,128], index: 8, kind: output, shape index: {}]
  %s9 = sld [smem:[#allocation0]]
  $region93: #{tpu_custom_call.1} parent=0
    _
  %s11 = ssub.s32 1, %s9
  %s12 = scalar_select 0, %s11, %s9
  $region1: #{tpu_custom_call.1} parent=0
    #allocation3 [shape = 'u8[131072]{0}', space=vmem, size = 0x20000, scoped, tag = 'input window, operand 0']
    #allocation4 [shape = 's32[2]{0}', space=sflag, size = 0x8, scoped, tag = 'scoped memory for tpu_custom_call.1']
    #allocation5 [shape = 's32[2]{0}', space=sflag, size = 0x8, scoped, tag = 'scoped memory for tpu_custom_call.1']
    #allocation6 [shape = 'u8[1024]{0}', space=vmem, size = 0x400, scoped, tag = 'input window, operand 1']
    #allocation7 [shape = 's32[2]{0}', space=sflag, size = 0x8, scoped, tag = 'scoped memory for tpu_custom_call.1']
    #allocation8 [shape = 'u8[65536]{0}', space=vmem, size = 0x10000, scoped, tag = 'input window, operand 2, single buffered']
    #allocation9 [shape = 'u8[65536]{0}', space=vmem, size = 0x10000, scoped, tag = 'input window, operand 3, single buffered']
    #allocation10 [shape = 's32[1]{0}', space=sflag, size = 0x4, scoped, tag = 'scoped memory for tpu_custom_call.1']
    #allocation11 [shape = 'u8[512]{0}', space=vmem, size = 0x400, scoped, tag = 'input window, operand 4, single buffered']
    #allocation12 [shape = 'u8[512]{0}', space=vmem, size = 0x400, scoped, tag = 'input window, operand 5, single buffered']
    #allocation13 [shape = 's32[1]{0}', space=sflag, size = 0x4, scoped, tag = 'scoped memory for tpu_custom_call.1']
    #allocation14 [shape = 'u8[1024]{0}', space=vmem, size = 0x400, scoped, tag = 'output window, operand 0']
    %13 = vsyncpa [#allocation4], 0
    %s14 = scalar_lea.sflag [#allocation4], 1
    %15 = vsyncpa %s14, 0
    %16 = vsyncpa [#allocation7], 0
    %s17 = scalar_lea.sflag [#allocation7], 1
    %18 = vsyncpa %s17, 0
    %19 = vsyncpa [#allocation10], 0
    %20 = vsyncpa [#allocation13], 0
    %21 = vsyncpa [#allocation5], 0
    %s22 = scalar_lea.sflag [#allocation5], 1
    %23 = vsyncpa %s22, 0
    loop: start=0, step=1, limit=4
    $region2: #{tpu_custom_call.1} parent=1 // loop_pre_header
      _
    $region3: #{tpu_custom_call.1} parent=1 // loop_header
      %s25 = sphi 0, %s29
      %p26 = scmp.ge.s32.totalorder %s25, 4
      %s32 = sphi 0, %s44
      %s33 = sphi 0, %s40
      %s34 = sphi 0, %s32
      %s35 = sphi 0, %s33
      %s36 = sphi 0, %s34
      %s37 = sphi 0, %s35
      %s47 = sphi 0, %s49
      %s50 = sphi 0, %s47
      %s51 = sphi 0, %s50
      %s67 = sphi 0, %s51
      %s75 = sphi 0, %s77
      %s78 = sphi 0, %s75
      %s79 = sphi 0, %s78
      %s95 = sphi 0, %s79
      %s101 = sphi 0, %s103
      %s104 = sphi 0, %s101
      %s105 = sphi 0, %s104
      %s121 = sphi 0, %s105
      %s125 = sphi 0, %s125
      %s127 = sphi 0, %s125
      %s128 = sphi 0, %s127
      %s142 = sphi 0, %s128
      %s146 = sphi 0, %s146
      %s148 = sphi 0, %s146
      %s149 = sphi 0, %s148
      %s163 = sphi 0, %s149
      %s167 = sphi 0, %s167
      %s169 = sphi 0, %s167
      %s170 = sphi 0, %s169
      %s184 = sphi 0, %s170
      %s190 = sphi 0, %s192
      %s193 = sphi 0, %s190
      %s194 = sphi 0, %s193
      %s210 = sphi 0, %s194
      %s216 = sphi 0, %s218
      %s219 = sphi 0, %s216
      %s220 = sphi 0, %s219
      %s236 = sphi 0, %s220
      %s242 = sphi 0, %s244
      %s245 = sphi 0, %s242
      %s246 = sphi 0, %s245
      %s262 = sphi 0, %s246
    $region4: #{tpu_custom_call.1} parent=1 // loop_header_branch
      %28 = sbr.rel (%p26) target = $region8
    $region5: #{tpu_custom_call.1} parent=1 // loop_body
      %s30 = ssub.s32 %s25, 1
      %s31 = ssub.s32 %s25, 2
      %s38 = sadd.s32 1, %s33
      %p39 = scmp.ge.s32.totalorder %s38, 1
      %s40 = scalar_select %p39, 0, %s38
      %s41 = sadd.s32 1, %s32
      %s42 = scalar_select %p39, %s41, %s32
      %p43 = scmp.ge.s32.totalorder %s42, 2
      %s44 = scalar_select %p43, 0, %s42
      %s45 = ssub.s32 %s32, %s44
      %p46 = scmp.eq.s32.totalorder %s45, 0
      %s48 = sadd.s32 %s47, 1
      %s49 = scalar_select %p46, %s47, %s48
      %p52 = pneg %p46
      %p53 = scmp.eq.s32.totalorder %s25, 1
      %p54 = por %p52, %p53
      %p55 = scmp.ne.s32.totalorder %s47, %s50
      %p56 = scmp.eq.s32.totalorder %s25, 0
      %p57 = por %p55, %p56
      %p58 = scmp.ne.s32.totalorder %s47, %s50
      %p59 = scmp.eq.s32.totalorder %s30, 1
      %p60 = por %p58, %p59
      %p61 = scmp.ne.s32.totalorder %s50, %s51
      %p62 = scmp.eq.s32.totalorder %s30, 0
      %p63 = por %p61, %p62
      %p64 = scmp.ne.s32.totalorder %s50, %s51
      %p65 = scmp.eq.s32.totalorder %s31, 1
      %p66 = por %p64, %p65
      %p68 = scmp.ne.s32.totalorder %s51, %s67
      %p69 = scmp.eq.s32.totalorder %s31, 0
      %p70 = por %p68, %p69
      %s71 = ssub.s32 %s32, %s44
      %s72 = ssub.s32 %s33, %s40
      %s73 = sor.u32 %s71, %s72
      %p74 = scmp.eq.s32.totalorder %s73, 0
      %s76 = sadd.s32 %s75, 1
      %s77 = scalar_select %p74, %s75, %s76
      %p80 = pneg %p74
      %p81 = scmp.eq.s32.totalorder %s25, 1
      %p82 = por %p80, %p81
      %p83 = scmp.ne.s32.totalorder %s75, %s78
      %p84 = scmp.eq.s32.totalorder %s25, 0
      %p85 = por %p83, %p84
      %p86 = scmp.ne.s32.totalorder %s75, %s78
      %p87 = scmp.eq.s32.totalorder %s30, 1
      %p88 = por %p86, %p87
      %p89 = scmp.ne.s32.totalorder %s78, %s79
      %p90 = scmp.eq.s32.totalorder %s30, 0
      %p91 = por %p89, %p90
      %p92 = scmp.ne.s32.totalorder %s78, %s79
      %p93 = scmp.eq.s32.totalorder %s31, 1
      %p94 = por %p92, %p93
      %p96 = scmp.ne.s32.totalorder %s79, %s95
      %p97 = scmp.eq.s32.totalorder %s31, 0
      %p98 = por %p96, %p97
      %s99 = ssub.s32 %s33, %s40
      %p100 = scmp.eq.s32.totalorder %s99, 0
      %s102 = sadd.s32 %s101, 1
      %s103 = scalar_select %p100, %s101, %s102
      %p106 = pneg %p100
      %p107 = scmp.eq.s32.totalorder %s25, 1
      %p108 = por %p106, %p107
      %p109 = scmp.ne.s32.totalorder %s101, %s104
      %p110 = scmp.eq.s32.totalorder %s25, 0
      %p111 = por %p109, %p110
      %p112 = scmp.ne.s32.totalorder %s101, %s104
      %p113 = scmp.eq.s32.totalorder %s30, 1
      %p114 = por %p112, %p113
      %p115 = scmp.ne.s32.totalorder %s104, %s105
      %p116 = scmp.eq.s32.totalorder %s30, 0
      %p117 = por %p115, %p116
      %p118 = scmp.ne.s32.totalorder %s104, %s105
      %p119 = scmp.eq.s32.totalorder %s31, 1
      %p120 = por %p118, %p119
      %p122 = scmp.ne.s32.totalorder %s105, %s121
      %p123 = scmp.eq.s32.totalorder %s31, 0
      %p124 = por %p122, %p123
      %s126 = sadd.s32 %s125, 1
      %p129 = scmp.eq.s32.totalorder %s25, 1
      %p130 = scmp.ne.s32.totalorder %s125, %s127
      %p131 = scmp.eq.s32.totalorder %s25, 0
      %p132 = por %p130, %p131
      %p133 = scmp.ne.s32.totalorder %s125, %s127
      %p134 = scmp.eq.s32.totalorder %s30, 1
      %p135 = por %p133, %p134
      %p136 = scmp.ne.s32.totalorder %s127, %s128
      %p137 = scmp.eq.s32.totalorder %s30, 0
      %p138 = por %p136, %p137
      %p139 = scmp.ne.s32.totalorder %s127, %s128
      %p140 = scmp.eq.s32.totalorder %s31, 1
      %p141 = por %p139, %p140
      %p143 = scmp.ne.s32.totalorder %s128, %s142
      %p144 = scmp.eq.s32.totalorder %s31, 0
      %p145 = por %p143, %p144
      %s147 = sadd.s32 %s146, 1
      %p150 = scmp.eq.s32.totalorder %s25, 1
      %p151 = scmp.ne.s32.totalorder %s146, %s148
      %p152 = scmp.eq.s32.totalorder %s25, 0
      %p153 = por %p151, %p152
      %p154 = scmp.ne.s32.totalorder %s146, %s148
      %p155 = scmp.eq.s32.totalorder %s30, 1
      %p156 = por %p154, %p155
      %p157 = scmp.ne.s32.totalorder %s148, %s149
      %p158 = scmp.eq.s32.totalorder %s30, 0
      %p159 = por %p157, %p158
      %p160 = scmp.ne.s32.totalorder %s148, %s149
      %p161 = scmp.eq.s32.totalorder %s31, 1
      %p162 = por %p160, %p161
      %p164 = scmp.ne.s32.totalorder %s149, %s163
      %p165 = scmp.eq.s32.totalorder %s31, 0
      %p166 = por %p164, %p165
      %s168 = sadd.s32 %s167, 1
      %p171 = scmp.eq.s32.totalorder %s25, 1
      %p172 = scmp.ne.s32.totalorder %s167, %s169
      %p173 = scmp.eq.s32.totalorder %s25, 0
      %p174 = por %p172, %p173
      %p175 = scmp.ne.s32.totalorder %s167, %s169
      %p176 = scmp.eq.s32.totalorder %s30, 1
      %p177 = por %p175, %p176
      %p178 = scmp.ne.s32.totalorder %s169, %s170
      %p179 = scmp.eq.s32.totalorder %s30, 0
      %p180 = por %p178, %p179
      %p181 = scmp.ne.s32.totalorder %s169, %s170
      %p182 = scmp.eq.s32.totalorder %s31, 1
      %p183 = por %p181, %p182
      %p185 = scmp.ne.s32.totalorder %s170, %s184
      %p186 = scmp.eq.s32.totalorder %s31, 0
      %p187 = por %p185, %p186
      %s188 = ssub.s32 %s32, %s44
      %p189 = scmp.eq.s32.totalorder %s188, 0
      %s191 = sadd.s32 %s190, 1
      %s192 = scalar_select %p189, %s190, %s191
      %p195 = pneg %p189
      %p196 = scmp.eq.s32.totalorder %s25, 1
      %p197 = por %p195, %p196
      %p198 = scmp.ne.s32.totalorder %s190, %s193
      %p199 = scmp.eq.s32.totalorder %s25, 0
      %p200 = por %p198, %p199
      %p201 = scmp.ne.s32.totalorder %s190, %s193
      %p202 = scmp.eq.s32.totalorder %s30, 1
      %p203 = por %p201, %p202
      %p204 = scmp.ne.s32.totalorder %s193, %s194
      %p205 = scmp.eq.s32.totalorder %s30, 0
      %p206 = por %p204, %p205
      %p207 = scmp.ne.s32.totalorder %s193, %s194
      %p208 = scmp.eq.s32.totalorder %s31, 1
      %p209 = por %p207, %p208
      %p211 = scmp.ne.s32.totalorder %s194, %s210
      %p212 = scmp.eq.s32.totalorder %s31, 0
      %p213 = por %p211, %p212
      %s214 = ssub.s32 %s32, %s44
      %p215 = scmp.eq.s32.totalorder %s214, 0
      %s217 = sadd.s32 %s216, 1
      %s218 = scalar_select %p215, %s216, %s217
      %p221 = pneg %p215
      %p222 = scmp.eq.s32.totalorder %s25, 1
      %p223 = por %p221, %p222
      %p224 = scmp.ne.s32.totalorder %s216, %s219
      %p225 = scmp.eq.s32.totalorder %s25, 0
      %p226 = por %p224, %p225
      %p227 = scmp.ne.s32.totalorder %s216, %s219
      %p228 = scmp.eq.s32.totalorder %s30, 1
      %p229 = por %p227, %p228
      %p230 = scmp.ne.s32.totalorder %s219, %s220
      %p231 = scmp.eq.s32.totalorder %s30, 0
      %p232 = por %p230, %p231
      %p233 = scmp.ne.s32.totalorder %s219, %s220
      %p234 = scmp.eq.s32.totalorder %s31, 1
      %p235 = por %p233, %p234
      %p237 = scmp.ne.s32.totalorder %s220, %s236
      %p238 = scmp.eq.s32.totalorder %s31, 0
      %p239 = por %p237, %p238
      %s240 = ssub.s32 %s32, %s44
      %p241 = scmp.eq.s32.totalorder %s240, 0
      %s243 = sadd.s32 %s242, 1
      %s244 = scalar_select %p241, %s242, %s243
      %p247 = pneg %p241
      %p248 = scmp.eq.s32.totalorder %s25, 1
      %p249 = por %p247, %p248
      %p250 = scmp.ne.s32.totalorder %s242, %s245
      %p251 = scmp.eq.s32.totalorder %s25, 0
      %p252 = por %p250, %p251
      %p253 = scmp.ne.s32.totalorder %s242, %s245
      %p254 = scmp.eq.s32.totalorder %s30, 1
      %p255 = por %p253, %p254
      %p256 = scmp.ne.s32.totalorder %s245, %s246
      %p257 = scmp.eq.s32.totalorder %s30, 0
      %p258 = por %p256, %p257
      %p259 = scmp.ne.s32.totalorder %s245, %s246
      %p260 = scmp.eq.s32.totalorder %s31, 1
      %p261 = por %p259, %p260
      %p263 = scmp.ne.s32.totalorder %s246, %s262
      %p264 = scmp.eq.s32.totalorder %s31, 0
      %p265 = por %p263, %p264
      %p266 = scmp.le.s32.totalorder 1, %s25
      %p267 = scmp.lt.s32.totalorder %s25, 3
      %p268 = pnand %p266, %p267
      %p269 = pneg %p268
      // Predicated region
      $region9: #{tpu_custom_call.1} parent=5 // pred_check
        _
      $region10: #{tpu_custom_call.1} parent=5 // pred_check_branch
        %271 = sbr.rel (%p268) target = $region12
      $region11: #{tpu_custom_call.1} parent=5 // pred_region
        %s272 = ssub.s32 %s25, 1
        // Predicated region
        $region13: #{tpu_custom_call.1} parent=11 // pred_check
          %p273 = pneg %p117
        $region14: #{tpu_custom_call.1} parent=11 // pred_check_branch
          %275 = sbr.rel (%p273) target = $region16
        $region15: #{tpu_custom_call.1} parent=11 // pred_region
          %277 = vsyncadd [#allocation7], 0
          %s278 = smul.addr %s35, 8
          %s279 = scalar_lea.hbm %s2, %s278
          %s280 = sshll.u32 %s279, 4
          %s281 = int_to_ptr.hbm [resolvable:$true] %s280
          %s282 = sshll.u32 [#allocation8], 4
          %s283 = int_to_ptr.vmem [resolvable:$true] %s282
          %288 = dma.hbm_to_vmem [thread:$0]  %s281, 2048, %s283, [#allocation7], 128, 128, 8
        $region16: #{tpu_custom_call.1} parent=11 // pred_fallthru
          _
        // Predicated region
        $region17: #{tpu_custom_call.1} parent=11 // pred_check
          %p289 = pneg %p138
        $region18: #{tpu_custom_call.1} parent=11 // pred_check_branch
          %291 = sbr.rel (%p289) target = $region20
        $region19: #{tpu_custom_call.1} parent=11 // pred_region
          %293 = vsyncadd [#allocation10], 0
          %s294 = sshll.u32 %s3, 4
          %s295 = int_to_ptr.hbm [resolvable:$true] %s294
          %s296 = sshll.u32 [#allocation9], 4
          %s297 = int_to_ptr.vmem [resolvable:$true] %s296
          %302 = dma.hbm_to_vmem [thread:$0]  %s295, 2048, %s297, [#allocation10], 128, 128, 8
        $region20: #{tpu_custom_call.1} parent=11 // pred_fallthru
          _
        // Predicated region
        $region21: #{tpu_custom_call.1} parent=11 // pred_check
          %p303 = pneg %p159
        $region22: #{tpu_custom_call.1} parent=11 // pred_check_branch
          %305 = sbr.rel (%p303) target = $region24
        $region23: #{tpu_custom_call.1} parent=11 // pred_region
          %307 = vsyncadd [#allocation10], 0
          %s309 = sshll.u32 %s4, 4
          %s310 = int_to_ptr.hbm [resolvable:$true] %s309
          %s311 = sshll.u32 [#allocation11], 4
          %s312 = int_to_ptr.vmem [resolvable:$true] %s311
          %314 = dma.hbm_to_vmem [thread:$0]  %s310, 16, %s312, [#allocation10]
        $region24: #{tpu_custom_call.1} parent=11 // pred_fallthru
          _
        // Predicated region
        $region25: #{tpu_custom_call.1} parent=11 // pred_check
          %p315 = pneg %p180
        $region26: #{tpu_custom_call.1} parent=11 // pred_check_branch
          %317 = sbr.rel (%p315) target = $region28
        $region27: #{tpu_custom_call.1} parent=11 // pred_region
          %319 = vsyncadd [#allocation13], 0
          %s321 = sshll.u32 %s5, 4
          %s322 = int_to_ptr.hbm [resolvable:$true] %s321
          %s323 = sshll.u32 [#allocation12], 4
          %s324 = int_to_ptr.vmem [resolvable:$true] %s323
          %326 = dma.hbm_to_vmem [thread:$0]  %s322, 16, %s324, [#allocation13]
        $region28: #{tpu_custom_call.1} parent=11 // pred_fallthru
          _
      $region12: #{tpu_custom_call.1} parent=5 // pred_fallthru
        _
      %p327 = scmp.lt.s32.totalorder %s25, 2
      // Predicated region
      $region29: #{tpu_custom_call.1} parent=5 // pred_check
        %p328 = pneg %p327
      $region30: #{tpu_custom_call.1} parent=5 // pred_check_branch
        %330 = sbr.rel (%p328) target = $region32
      $region31: #{tpu_custom_call.1} parent=5 // pred_region
        // Predicated region
        $region33: #{tpu_custom_call.1} parent=31 // pred_check
          %p331 = pneg %p57
        $region34: #{tpu_custom_call.1} parent=31 // pred_check_branch
          %333 = sbr.rel (%p331) target = $region36
        $region35: #{tpu_custom_call.1} parent=31 // pred_region
          %s334 = sand.u32 %s47, 1
          %s335 = scalar_lea.sflag [#allocation4], %s334
          %s336 = sand.u32 %s47, 1
          %s337 = smul.addr %s336, 128
          %s338 = scalar_lea.vmem [#allocation3], %s337
          %340 = vsyncadd %s335, 0
          %s341 = smul.addr %s32, 16
          %s342 = smul.addr %s341, 8
          %s343 = scalar_lea.hbm %s0, %s342
          %s344 = sshll.u32 %s343, 4
          %s345 = int_to_ptr.hbm [resolvable:$true] %s344
          %s346 = sshll.u32 %s338, 4
          %s347 = int_to_ptr.vmem [resolvable:$true] %s346
          %352 = dma.hbm_to_vmem [thread:$0]  %s345, 2048, %s347, %s335, 128, 128, 8
        $region36: #{tpu_custom_call.1} parent=31 // pred_fallthru
          _
        // Predicated region
        $region37: #{tpu_custom_call.1} parent=31 // pred_check
          %p353 = pneg %p85
        $region38: #{tpu_custom_call.1} parent=31 // pred_check_branch
          %355 = sbr.rel (%p353) target = $region40
        $region39: #{tpu_custom_call.1} parent=31 // pred_region
          %s356 = sand.u32 %s25, 1
          %s357 = scalar_lea.sflag [#allocation7], %s356
          %s358 = sand.u32 %s75, 1
          %s359 = scalar_lea.vmem [#allocation6], %s358
          %361 = vsyncadd %s357, 0
          %s362 = sadd.s32 %s33, %s32
          %s363 = scalar_lea.hbm %s1, %s362
          %s365 = sshll.u32 %s363, 4
          %s366 = int_to_ptr.hbm [resolvable:$true] %s365
          %s367 = sshll.u32 %s359, 4
          %s368 = int_to_ptr.vmem [resolvable:$true] %s367
          %370 = dma.hbm_to_vmem [thread:$0]  %s366, 16, %s368, %s357
        $region40: #{tpu_custom_call.1} parent=31 // pred_fallthru
          _
        // Predicated region
        $region41: #{tpu_custom_call.1} parent=31 // pred_check
          %p371 = pneg %p200
        $region42: #{tpu_custom_call.1} parent=31 // pred_check_branch
          %373 = sbr.rel (%p371) target = $region44
        $region43: #{tpu_custom_call.1} parent=31 // pred_region
          %p374 = scmp.lt.s32.totalorder %s32, 1
          %s375 = scalar_select %p374, %s32, 1
          %s376 = scalar_lea.vmem %s6, %s375
        $region44: #{tpu_custom_call.1} parent=31 // pred_fallthru
          _
        // Predicated region
        $region45: #{tpu_custom_call.1} parent=31 // pred_check
          %p377 = pneg %p226
        $region46: #{tpu_custom_call.1} parent=31 // pred_check_branch
          %379 = sbr.rel (%p377) target = $region48
        $region47: #{tpu_custom_call.1} parent=31 // pred_region
          %p380 = scmp.lt.s32.totalorder %s32, 1
          %s381 = scalar_select %p380, %s32, 1
          %s382 = scalar_lea.vmem %s7, %s381
        $region48: #{tpu_custom_call.1} parent=31 // pred_fallthru
          _
      $region32: #{tpu_custom_call.1} parent=5 // pred_fallthru
        _
      %p383 = scmp.le.s32.totalorder 1, %s25
      %p384 = scmp.lt.s32.totalorder %s25, 3
      %p385 = pnand %p383, %p384
      %p386 = pneg %p385
      // Predicated region
      $region49: #{tpu_custom_call.1} parent=5 // pred_check
        _
      $region50: #{tpu_custom_call.1} parent=5 // pred_check_branch
        %388 = sbr.rel (%p385) target = $region52
      $region51: #{tpu_custom_call.1} parent=5 // pred_region
        %s389 = ssub.s32 %s25, 1
        %s390 = sand.u32 %s50, 1
        %s391 = scalar_lea.sflag [#allocation4], %s390
        %s392 = sand.u32 %s50, 1
        %s393 = smul.addr %s392, 128
        %s394 = scalar_lea.vmem [#allocation3], %s393
        // Predicated region
        $region53: #{tpu_custom_call.1} parent=51 // pred_check
          %p395 = pneg %p63
        $region54: #{tpu_custom_call.1} parent=51 // pred_check_branch
          %397 = sbr.rel (%p395) target = $region56
        $region55: #{tpu_custom_call.1} parent=51 // pred_region
          %399 = dma.done %s391, 2048
        $region56: #{tpu_custom_call.1} parent=51 // pred_fallthru
          _
        %s400 = sand.u32 %s30, 1
        %s401 = scalar_lea.sflag [#allocation7], %s400
        %s402 = sand.u32 %s78, 1
        %s403 = scalar_lea.vmem [#allocation6], %s402
        // Predicated region
        $region57: #{tpu_custom_call.1} parent=51 // pred_check
          %p404 = pneg %p91
        $region58: #{tpu_custom_call.1} parent=51 // pred_check_branch
          %406 = sbr.rel (%p404) target = $region60
        $region59: #{tpu_custom_call.1} parent=51 // pred_region
          %408 = dma.done %s401, 16
        $region60: #{tpu_custom_call.1} parent=51 // pred_fallthru
          _
        // Predicated region
        $region61: #{tpu_custom_call.1} parent=51 // pred_check
          %p409 = pneg %p117
        $region62: #{tpu_custom_call.1} parent=51 // pred_check_branch
          %411 = sbr.rel (%p409) target = $region64
        $region63: #{tpu_custom_call.1} parent=51 // pred_region
          %413 = dma.done [#allocation7], 2048
        $region64: #{tpu_custom_call.1} parent=51 // pred_fallthru
          _
        // Predicated region
        $region65: #{tpu_custom_call.1} parent=51 // pred_check
          %p414 = pneg %p138
        $region66: #{tpu_custom_call.1} parent=51 // pred_check_branch
          %416 = sbr.rel (%p414) target = $region68
        $region67: #{tpu_custom_call.1} parent=51 // pred_region
          %418 = dma.done [#allocation10], 2048
        $region68: #{tpu_custom_call.1} parent=51 // pred_fallthru
          _
        // Predicated region
        $region69: #{tpu_custom_call.1} parent=51 // pred_check
          %p419 = pneg %p159
        $region70: #{tpu_custom_call.1} parent=51 // pred_check_branch
          %421 = sbr.rel (%p419) target = $region72
        $region71: #{tpu_custom_call.1} parent=51 // pred_region
          %423 = dma.done [#allocation10], 16
        $region72: #{tpu_custom_call.1} parent=51 // pred_fallthru
          _
        // Predicated region
        $region73: #{tpu_custom_call.1} parent=51 // pred_check
          %p424 = pneg %p180
        $region74: #{tpu_custom_call.1} parent=51 // pred_check_branch
          %426 = sbr.rel (%p424) target = $region76
        $region75: #{tpu_custom_call.1} parent=51 // pred_region
          %428 = dma.done [#allocation13], 16
        $region76: #{tpu_custom_call.1} parent=51 // pred_fallthru
          _
        %s429 = sand.u32 %s50, 1
        %s430 = scalar_lea.sflag [#allocation4], %s429
        %s431 = sand.u32 %s50, 1
        %s432 = smul.addr %s431, 128
        %s433 = scalar_lea.vmem [#allocation3], %s432
        %p434 = pneg %p63
        %p435 = pneg %p60
        %s436 = sand.u32 %s30, 1
        %s437 = scalar_lea.sflag [#allocation7], %s436
        %s438 = sand.u32 %s78, 1
        %s439 = scalar_lea.vmem [#allocation6], %s438
        %p440 = pneg %p91
        %p441 = pneg %p88
        %p442 = pneg %p117
        %p443 = pneg %p114
        %p444 = pneg %p138
        %p445 = pneg %p135
        %p446 = pneg %p159
        %p447 = pneg %p156
        %p448 = pneg %p180
        %p449 = pneg %p177
        %p450 = scmp.lt.s32.totalorder %s34, 1
        %s451 = scalar_select %p450, %s34, 1
        %s452 = scalar_lea.vmem %s6, %s451
        %p453 = pneg %p206
        %p454 = pneg %p203
        %p455 = scmp.lt.s32.totalorder %s34, 1
        %s456 = scalar_select %p455, %s34, 1
        %s457 = scalar_lea.vmem %s7, %s456
        %p458 = pneg %p232
        %p459 = pneg %p229
        %p460 = pneg %p258
        %p461 = pneg %p255
        %s462 = sand.u32 %s245, 1
        %s463 = scalar_lea.sflag [#allocation5], %s462
        %s464 = sand.u32 %s245, 1
        %s465 = scalar_lea.vmem [#allocation14], %s464
        %p466 = scmp.lt.s32.totalorder %s34, 1
        %s467 = scalar_select %p466, %s34, 1
        %s468 = scalar_lea.vmem %s6, %s467
        %p469 = scmp.lt.s32.totalorder %s34, 1
        %s470 = scalar_select %p469, %s34, 1
        %s471 = scalar_lea.vmem %s7, %s470
        %p472 = scmp.eq.s32.totalorder %s35, 0
        // Predicated region
        $region77: #{tpu_custom_call.1} parent=51 // pred_check
          %p473 = pneg %p472
        $region78: #{tpu_custom_call.1} parent=51 // pred_check_branch
          %475 = sbr.rel (%p473) target = $region80
        $region79: #{tpu_custom_call.1} parent=51 // pred_region
          %v476 = vld [vmem:[%s394] sm:$0xff]
          %v477 = vld [vmem:[%s394 + $0x8] sm:$0xff]
          %v478 = vld [vmem:[%s394 + $0x10] sm:$0xff]
          %v479 = vld [vmem:[%s394 + $0x18] sm:$0xff]
          %v480 = vld [vmem:[%s394 + $0x20] sm:$0xff]
          %v481 = vld [vmem:[%s394 + $0x28] sm:$0xff]
          %v482 = vld [vmem:[%s394 + $0x30] sm:$0xff]
          %v483 = vld [vmem:[%s394 + $0x38] sm:$0xff]
          %v484 = vld [vmem:[%s394 + $0x40] sm:$0xff]
          %v485 = vld [vmem:[%s394 + $0x48] sm:$0xff]
          %v486 = vld [vmem:[%s394 + $0x50] sm:$0xff]
          %v487 = vld [vmem:[%s394 + $0x58] sm:$0xff]
          %v488 = vld [vmem:[%s394 + $0x60] sm:$0xff]
          %v489 = vld [vmem:[%s394 + $0x68] sm:$0xff]
          %v490 = vld [vmem:[%s394 + $0x70] sm:$0xff]
          %v491 = vld [vmem:[%s394 + $0x78] sm:$0xff]
          %v492 = vsub.f32 0.0, %v476
          %v493 = vsub.f32 0.0, %v477
          %v494 = vsub.f32 0.0, %v478
          %v495 = vsub.f32 0.0, %v479
          %v496 = vsub.f32 0.0, %v480
          %v497 = vsub.f32 0.0, %v481
          %v498 = vsub.f32 0.0, %v482
          %v499 = vsub.f32 0.0, %v483
          %v500 = vsub.f32 0.0, %v484
          %v501 = vsub.f32 0.0, %v485
          %v502 = vsub.f32 0.0, %v486
          %v503 = vsub.f32 0.0, %v487
          %v504 = vsub.f32 0.0, %v488
          %v505 = vsub.f32 0.0, %v489
          %v506 = vsub.f32 0.0, %v490
          %v507 = vsub.f32 0.0, %v491
          %v508 = vld [vmem:[#allocation9] sm:$0xff]
          %v509 = vld [vmem:[#allocation9 + $0x8] sm:$0xff]
          %v510 = vld [vmem:[#allocation9 + $0x10] sm:$0xff]
          %v511 = vld [vmem:[#allocation9 + $0x18] sm:$0xff]
          %v512 = vld [vmem:[#allocation9 + $0x20] sm:$0xff]
          %v513 = vld [vmem:[#allocation9 + $0x28] sm:$0xff]
          %v514 = vld [vmem:[#allocation9 + $0x30] sm:$0xff]
          %v515 = vld [vmem:[#allocation9 + $0x38] sm:$0xff]
          %v516 = vld [vmem:[#allocation9 + $0x40] sm:$0xff]
          %v517 = vld [vmem:[#allocation9 + $0x48] sm:$0xff]
          %v518 = vld [vmem:[#allocation9 + $0x50] sm:$0xff]
          %v519 = vld [vmem:[#allocation9 + $0x58] sm:$0xff]
          %v520 = vld [vmem:[#allocation9 + $0x60] sm:$0xff]
          %v521 = vld [vmem:[#allocation9 + $0x68] sm:$0xff]
          %v522 = vld [vmem:[#allocation9 + $0x70] sm:$0xff]
          %v523 = vld [vmem:[#allocation9 + $0x78] sm:$0xff]
          %524 = vmatpush.msra.mxu0 %v523
          %525 = vmatpush.msra.mxu0 %v522
          %526 = vmatpush.msra.mxu0 %v521
          %527 = vmatpush.msra.mxu0 %v520
          %528 = vmatpush.msra.mxu0 %v519
          %529 = vmatpush.msra.mxu0 %v518
          %530 = vmatpush.msra.mxu0 %v517
          %531 = vmatpush.msra.mxu0 %v516
          %532 = vmatpush.msra.mxu0 %v515
          %533 = vmatpush.msra.mxu0 %v514
          %534 = vmatpush.msra.mxu0 %v513
          %535 = vmatpush.msra.mxu0 %v512
          %536 = vmatpush.msra.mxu0 %v511
          %537 = vmatpush.msra.mxu0 %v510
          %538 = vmatpush.msra.mxu0 %v509
          %539 = vmatpush.msra.mxu0 %v508
          %540 = vmatmul.f32.gmra.mxu0 %v492
          %v541 = vpop.f32.mrf.mxu0
          %v542 = vadd.f32 0.0, %v541
          %543 = vmatmul.f32.gmra.mxu0 %v493
          %v544 = vpop.f32.mrf.mxu0
          %v545 = vadd.f32 0.0, %v544
          %546 = vmatmul.f32.gmra.mxu0 %v494
          %v547 = vpop.f32.mrf.mxu0
          %v548 = vadd.f32 0.0, %v547
          %549 = vmatmul.f32.gmra.mxu0 %v495
          %v550 = vpop.f32.mrf.mxu0
          %v551 = vadd.f32 0.0, %v550
          %552 = vmatmul.f32.gmra.mxu0 %v496
          %v553 = vpop.f32.mrf.mxu0
          %v554 = vadd.f32 0.0, %v553
          %555 = vmatmul.f32.gmra.mxu0 %v497
          %v556 = vpop.f32.mrf.mxu0
          %v557 = vadd.f32 0.0, %v556
          %558 = vmatmul.f32.gmra.mxu0 %v498
          %v559 = vpop.f32.mrf.mxu0
          %v560 = vadd.f32 0.0, %v559
          %561 = vmatmul.f32.gmra.mxu0 %v499
          %v562 = vpop.f32.mrf.mxu0
          %v563 = vadd.f32 0.0, %v562
          %564 = vmatmul.f32.gmra.mxu0 %v500
          %v565 = vpop.f32.mrf.mxu0
          %v566 = vadd.f32 0.0, %v565
          %567 = vmatmul.f32.gmra.mxu0 %v501
          %v568 = vpop.f32.mrf.mxu0
          %v569 = vadd.f32 0.0, %v568
          %570 = vmatmul.f32.gmra.mxu0 %v502
          %v571 = vpop.f32.mrf.mxu0
          %v572 = vadd.f32 0.0, %v571
          %573 = vmatmul.f32.gmra.mxu0 %v503
          %v574 = vpop.f32.mrf.mxu0
          %v575 = vadd.f32 0.0, %v574
          %576 = vmatmul.f32.gmra.mxu0 %v504
          %v577 = vpop.f32.mrf.mxu0
          %v578 = vadd.f32 0.0, %v577
          %579 = vmatmul.f32.gmra.mxu0 %v505
          %v580 = vpop.f32.mrf.mxu0
          %v581 = vadd.f32 0.0, %v580
          %582 = vmatmul.f32.gmra.mxu0 %v506
          %v583 = vpop.f32.mrf.mxu0
          %v584 = vadd.f32 0.0, %v583
          %585 = vmatmul.f32.gmra.mxu0 %v507
          %v586 = vpop.f32.mrf.mxu0
          %v587 = vadd.f32 0.0, %v586
          %588 = vdwg.mxu0
          %v589 = vld [vmem:[%s468] sm:$0x1]
          %v591 = vperm.slane %v589, 0
          %v593 = vmul.f32 %v542, %v591
          %v594 = vmul.f32 %v545, %v591
          %v595 = vmul.f32 %v548, %v591
          %v596 = vmul.f32 %v551, %v591
          %v597 = vmul.f32 %v554, %v591
          %v598 = vmul.f32 %v557, %v591
          %v599 = vmul.f32 %v560, %v591
          %v600 = vmul.f32 %v563, %v591
          %v601 = vmul.f32 %v566, %v591
          %v602 = vmul.f32 %v569, %v591
          %v603 = vmul.f32 %v572, %v591
          %v604 = vmul.f32 %v575, %v591
          %v605 = vmul.f32 %v578, %v591
          %v606 = vmul.f32 %v581, %v591
          %v607 = vmul.f32 %v584, %v591
          %v608 = vmul.f32 %v587, %v591
          %609 = vst [vmem:[#allocation2] sm:$0xff] %v593
          %610 = vst [vmem:[#allocation2 + $0x8] sm:$0xff] %v594
          %611 = vst [vmem:[#allocation2 + $0x10] sm:$0xff] %v595
          %612 = vst [vmem:[#allocation2 + $0x18] sm:$0xff] %v596
          %613 = vst [vmem:[#allocation2 + $0x20] sm:$0xff] %v597
          %614 = vst [vmem:[#allocation2 + $0x28] sm:$0xff] %v598
          %615 = vst [vmem:[#allocation2 + $0x30] sm:$0xff] %v599
          %616 = vst [vmem:[#allocation2 + $0x38] sm:$0xff] %v600
          %617 = vst [vmem:[#allocation2 + $0x40] sm:$0xff] %v601
          %618 = vst [vmem:[#allocation2 + $0x48] sm:$0xff] %v602
          %619 = vst [vmem:[#allocation2 + $0x50] sm:$0xff] %v603
          %620 = vst [vmem:[#allocation2 + $0x58] sm:$0xff] %v604
          %621 = vst [vmem:[#allocation2 + $0x60] sm:$0xff] %v605
          %622 = vst [vmem:[#allocation2 + $0x68] sm:$0xff] %v606
          %623 = vst [vmem:[#allocation2 + $0x70] sm:$0xff] %v607
          %624 = vst [vmem:[#allocation2 + $0x78] sm:$0xff] %v608
          %v625 = vmax.f32 %v593, 0.0
          %v626 = vmax.f32 %v594, 0.0
          %v627 = vmax.f32 %v595, 0.0
          %v628 = vmax.f32 %v596, 0.0
          %v629 = vmax.f32 %v597, 0.0
          %v630 = vmax.f32 %v598, 0.0
          %v631 = vmax.f32 %v599, 0.0
          %v632 = vmax.f32 %v600, 0.0
          %v633 = vmax.f32 %v601, 0.0
          %v634 = vmax.f32 %v602, 0.0
          %v635 = vmax.f32 %v603, 0.0
          %v636 = vmax.f32 %v604, 0.0
          %v637 = vmax.f32 %v605, 0.0
          %v638 = vmax.f32 %v606, 0.0
          %v639 = vmax.f32 %v607, 0.0
          %v640 = vmax.f32 %v608, 0.0
          %v641 = vld [vmem:[%s471] sm:$0x1]
          %v643 = vperm.slane %v641, 0
          %v645 = vmul.f32 %v625, %v643
          %v646 = vmul.f32 %v626, %v643
          %v647 = vmul.f32 %v627, %v643
          %v648 = vmul.f32 %v628, %v643
          %v649 = vmul.f32 %v629, %v643
          %v650 = vmul.f32 %v630, %v643
          %v651 = vmul.f32 %v631, %v643
          %v652 = vmul.f32 %v632, %v643
          %v653 = vmul.f32 %v633, %v643
          %v654 = vmul.f32 %v634, %v643
          %v655 = vmul.f32 %v635, %v643
          %v656 = vmul.f32 %v636, %v643
          %v657 = vmul.f32 %v637, %v643
          %v658 = vmul.f32 %v638, %v643
          %v659 = vmul.f32 %v639, %v643
          %v660 = vmul.f32 %v640, %v643
          %v661 = vld [vmem:[#allocation11] sm:$0x1]
          %v663 = vperm.slane %v661, 0
          %v665 = vmul.f32 %v593, %v663
          %v666 = vmul.f32 %v594, %v663
          %v667 = vmul.f32 %v595, %v663
          %v668 = vmul.f32 %v596, %v663
          %v669 = vmul.f32 %v597, %v663
          %v670 = vmul.f32 %v598, %v663
          %v671 = vmul.f32 %v599, %v663
          %v672 = vmul.f32 %v600, %v663
          %v673 = vmul.f32 %v601, %v663
          %v674 = vmul.f32 %v602, %v663
          %v675 = vmul.f32 %v603, %v663
          %v676 = vmul.f32 %v604, %v663
          %v677 = vmul.f32 %v605, %v663
          %v678 = vmul.f32 %v606, %v663
          %v679 = vmul.f32 %v607, %v663
          %v680 = vmul.f32 %v608, %v663
          %v681 = vsub.f32 %v645, %v665
          %v682 = vsub.f32 %v646, %v666
          %v683 = vsub.f32 %v647, %v667
          %v684 = vsub.f32 %v648, %v668
          %v685 = vsub.f32 %v649, %v669
          %v686 = vsub.f32 %v650, %v670
          %v687 = vsub.f32 %v651, %v671
          %v688 = vsub.f32 %v652, %v672
          %v689 = vsub.f32 %v653, %v673
          %v690 = vsub.f32 %v654, %v674
          %v691 = vsub.f32 %v655, %v675
          %v692 = vsub.f32 %v656, %v676
          %v693 = vsub.f32 %v657, %v677
          %v694 = vsub.f32 %v658, %v678
          %v695 = vsub.f32 %v659, %v679
          %v696 = vsub.f32 %v660, %v680
          %697 = vadd.xlane.f32.xlu0 %v681
          %v698 = vpop.xlane.xlu0 %697
          %699 = vadd.xlane.f32.xlu0 %v682
          %v700 = vpop.xlane.xlu0 %699
          %701 = vadd.xlane.f32.xlu0 %v683
          %v702 = vpop.xlane.xlu0 %701
          %703 = vadd.xlane.f32.xlu0 %v684
          %v704 = vpop.xlane.xlu0 %703
          %705 = vadd.xlane.f32.xlu0 %v685
          %v706 = vpop.xlane.xlu0 %705
          %707 = vadd.xlane.f32.xlu0 %v686
          %v708 = vpop.xlane.xlu0 %707
          %709 = vadd.xlane.f32.xlu0 %v687
          %v710 = vpop.xlane.xlu0 %709
          %711 = vadd.xlane.f32.xlu0 %v688
          %v712 = vpop.xlane.xlu0 %711
          %713 = vadd.xlane.f32.xlu0 %v689
          %v714 = vpop.xlane.xlu0 %713
          %715 = vadd.xlane.f32.xlu0 %v690
          %v716 = vpop.xlane.xlu0 %715
          %717 = vadd.xlane.f32.xlu0 %v691
          %v718 = vpop.xlane.xlu0 %717
          %719 = vadd.xlane.f32.xlu0 %v692
          %v720 = vpop.xlane.xlu0 %719
          %721 = vadd.xlane.f32.xlu0 %v693
          %v722 = vpop.xlane.xlu0 %721
          %723 = vadd.xlane.f32.xlu0 %v694
          %v724 = vpop.xlane.xlu0 %723
          %725 = vadd.xlane.f32.xlu0 %v695
          %v726 = vpop.xlane.xlu0 %725
          %727 = vadd.xlane.f32.xlu0 %v696
          %v728 = vpop.xlane.xlu0 %727
          %v729 = vld [vmem:[#allocation12] sm:$0x1]
          %v731 = vperm.slane %v729, 0
          %v733 = vmul.f32 %v476, %v731
          %v734 = vmul.f32 %v477, %v731
          %v735 = vmul.f32 %v478, %v731
          %v736 = vmul.f32 %v479, %v731
          %v737 = vmul.f32 %v480, %v731
          %v738 = vmul.f32 %v481, %v731
          %v739 = vmul.f32 %v482, %v731
          %v740 = vmul.f32 %v483, %v731
          %v741 = vmul.f32 %v484, %v731
          %v742 = vmul.f32 %v485, %v731
          %v743 = vmul.f32 %v486, %v731
          %v744 = vmul.f32 %v487, %v731
          %v745 = vmul.f32 %v488, %v731
          %v746 = vmul.f32 %v489, %v731
          %v747 = vmul.f32 %v490, %v731
          %v748 = vmul.f32 %v491, %v731
          %749 = vadd.xlane.f32.xlu0 %v733
          %v750 = vpop.xlane.xlu0 %749
          %751 = vadd.xlane.f32.xlu0 %v734
          %v752 = vpop.xlane.xlu0 %751
          %753 = vadd.xlane.f32.xlu0 %v735
          %v754 = vpop.xlane.xlu0 %753
          %755 = vadd.xlane.f32.xlu0 %v736
          %v756 = vpop.xlane.xlu0 %755
          %757 = vadd.xlane.f32.xlu0 %v737
          %v758 = vpop.xlane.xlu0 %757
          %759 = vadd.xlane.f32.xlu0 %v738
          %v760 = vpop.xlane.xlu0 %759
          %761 = vadd.xlane.f32.xlu0 %v739
          %v762 = vpop.xlane.xlu0 %761
          %763 = vadd.xlane.f32.xlu0 %v740
          %v764 = vpop.xlane.xlu0 %763
          %765 = vadd.xlane.f32.xlu0 %v741
          %v766 = vpop.xlane.xlu0 %765
          %767 = vadd.xlane.f32.xlu0 %v742
          %v768 = vpop.xlane.xlu0 %767
          %769 = vadd.xlane.f32.xlu0 %v743
          %v770 = vpop.xlane.xlu0 %769
          %771 = vadd.xlane.f32.xlu0 %v744
          %v772 = vpop.xlane.xlu0 %771
          %773 = vadd.xlane.f32.xlu0 %v745
          %v774 = vpop.xlane.xlu0 %773
          %775 = vadd.xlane.f32.xlu0 %v746
          %v776 = vpop.xlane.xlu0 %775
          %777 = vadd.xlane.f32.xlu0 %v747
          %v778 = vpop.xlane.xlu0 %777
          %779 = vadd.xlane.f32.xlu0 %v748
          %v780 = vpop.xlane.xlu0 %779
          %v781 = vadd.f32 %v698, %v750
          %v782 = vadd.f32 %v700, %v752
          %v783 = vadd.f32 %v702, %v754
          %v784 = vadd.f32 %v704, %v756
          %v785 = vadd.f32 %v706, %v758
          %v786 = vadd.f32 %v708, %v760
          %v787 = vadd.f32 %v710, %v762
          %v788 = vadd.f32 %v712, %v764
          %v789 = vadd.f32 %v714, %v766
          %v790 = vadd.f32 %v716, %v768
          %v791 = vadd.f32 %v718, %v770
          %v792 = vadd.f32 %v720, %v772
          %v793 = vadd.f32 %v722, %v774
          %v794 = vadd.f32 %v724, %v776
          %v795 = vadd.f32 %v726, %v778
          %v796 = vadd.f32 %v728, %v780
          %v813 = vlaneseq
          %v814 = vand.u32 %v813, 127
          %v815 = vperm.slane %v781, %v814
          %v816 = vadd.s32 %v814, 4294967288
          %v817 = vperm.slane %v782, %v816
          %vm818 = vcmask 130112
          %v819 = vsel %vm818, %v817, %v815
          %v820 = vadd.s32 %v814, 4294967280
          %v821 = vperm.slane %v783, %v820
          %vm822 = vcmask 195712
          %v823 = vsel %vm822, %v821, %v819
          %v824 = vadd.s32 %v814, 4294967272
          %v825 = vperm.slane %v784, %v824
          %vm826 = vcmask 261312
          %v827 = vsel %vm826, %v825, %v823
          %v828 = vadd.s32 %v814, 4294967264
          %v829 = vperm.slane %v785, %v828
          %vm830 = vcmask 326912
          %v831 = vsel %vm830, %v829, %v827
          %v832 = vadd.s32 %v814, 4294967256
          %v833 = vperm.slane %v786, %v832
          %vm834 = vcmask 392512
          %v835 = vsel %vm834, %v833, %v831
          %v836 = vadd.s32 %v814, 4294967248
          %v837 = vperm.slane %v787, %v836
          %vm838 = vcmask 458112
          %v839 = vsel %vm838, %v837, %v835
          %v840 = vadd.s32 %v814, 4294967240
          %v841 = vperm.slane %v788, %v840
          %vm842 = vcmask 523712
          %v843 = vsel %vm842, %v841, %v839
          %v844 = vadd.s32 %v814, 4294967232
          %v845 = vperm.slane %v789, %v844
          %vm846 = vcmask 589312
          %v847 = vsel %vm846, %v845, %v843
          %v848 = vadd.s32 %v814, 4294967224
          %v849 = vperm.slane %v790, %v848
          %vm850 = vcmask 654912
          %v851 = vsel %vm850, %v849, %v847
          %v852 = vadd.s32 %v814, 4294967216
          %v853 = vperm.slane %v791, %v852
          %vm854 = vcmask 720512
          %v855 = vsel %vm854, %v853, %v851
          %v856 = vadd.s32 %v814, 4294967208
          %v857 = vperm.slane %v792, %v856
          %vm858 = vcmask 786112
          %v859 = vsel %vm858, %v857, %v855
          %v860 = vadd.s32 %v814, 4294967200
          %v861 = vperm.slane %v793, %v860
          %vm862 = vcmask 851712
          %v863 = vsel %vm862, %v861, %v859
          %v864 = vadd.s32 %v814, 4294967192
          %v865 = vperm.slane %v794, %v864
          %vm866 = vcmask 917312
          %v867 = vsel %vm866, %v865, %v863
          %v868 = vadd.s32 %v814, 4294967184
          %v869 = vperm.slane %v795, %v868
          %vm870 = vcmask 982912
          %v871 = vsel %vm870, %v869, %v867
          %v872 = vadd.s32 %v814, 4294967176
          %v873 = vperm.slane %v796, %v872
          %vm874 = vcmask 1048512
          %v875 = vsel %vm874, %v873, %v871
          %877 = vst [vmem:[%s465] sm:$0x1] %v875
        $region80: #{tpu_custom_call.1} parent=51 // pred_fallthru
          _
        %v878 = vld [vmem:[#allocation2] sm:$0xff]
        %v879 = vld [vmem:[#allocation2 + $0x8] sm:$0xff]
        %v880 = vld [vmem:[#allocation2 + $0x10] sm:$0xff]
        %v881 = vld [vmem:[#allocation2 + $0x18] sm:$0xff]
        %v882 = vld [vmem:[#allocation2 + $0x20] sm:$0xff]
        %v883 = vld [vmem:[#allocation2 + $0x28] sm:$0xff]
        %v884 = vld [vmem:[#allocation2 + $0x30] sm:$0xff]
        %v885 = vld [vmem:[#allocation2 + $0x38] sm:$0xff]
        %v886 = vld [vmem:[#allocation2 + $0x40] sm:$0xff]
        %v887 = vld [vmem:[#allocation2 + $0x48] sm:$0xff]
        %v888 = vld [vmem:[#allocation2 + $0x50] sm:$0xff]
        %v889 = vld [vmem:[#allocation2 + $0x58] sm:$0xff]
        %v890 = vld [vmem:[#allocation2 + $0x60] sm:$0xff]
        %v891 = vld [vmem:[#allocation2 + $0x68] sm:$0xff]
        %v892 = vld [vmem:[#allocation2 + $0x70] sm:$0xff]
        %v893 = vld [vmem:[#allocation2 + $0x78] sm:$0xff]
        %v894 = vld [vmem:[#allocation8] sm:$0xff]
        %v895 = vld [vmem:[#allocation8 + $0x8] sm:$0xff]
        %v896 = vld [vmem:[#allocation8 + $0x10] sm:$0xff]
        %v897 = vld [vmem:[#allocation8 + $0x18] sm:$0xff]
        %v898 = vld [vmem:[#allocation8 + $0x20] sm:$0xff]
        %v899 = vld [vmem:[#allocation8 + $0x28] sm:$0xff]
        %v900 = vld [vmem:[#allocation8 + $0x30] sm:$0xff]
        %v901 = vld [vmem:[#allocation8 + $0x38] sm:$0xff]
        %v902 = vld [vmem:[#allocation8 + $0x40] sm:$0xff]
        %v903 = vld [vmem:[#allocation8 + $0x48] sm:$0xff]
        %v904 = vld [vmem:[#allocation8 + $0x50] sm:$0xff]
        %v905 = vld [vmem:[#allocation8 + $0x58] sm:$0xff]
        %v906 = vld [vmem:[#allocation8 + $0x60] sm:$0xff]
        %v907 = vld [vmem:[#allocation8 + $0x68] sm:$0xff]
        %v908 = vld [vmem:[#allocation8 + $0x70] sm:$0xff]
        %v909 = vld [vmem:[#allocation8 + $0x78] sm:$0xff]
        %910 = vmatpush.msra.mxu0 %v909
        %911 = vmatpush.msra.mxu0 %v908
        %912 = vmatpush.msra.mxu0 %v907
        %913 = vmatpush.msra.mxu0 %v906
        %914 = vmatpush.msra.mxu0 %v905
        %915 = vmatpush.msra.mxu0 %v904
        %916 = vmatpush.msra.mxu0 %v903
        %917 = vmatpush.msra.mxu0 %v902
        %918 = vmatpush.msra.mxu0 %v901
        %919 = vmatpush.msra.mxu0 %v900
        %920 = vmatpush.msra.mxu0 %v899
        %921 = vmatpush.msra.mxu0 %v898
        %922 = vmatpush.msra.mxu0 %v897
        %923 = vmatpush.msra.mxu0 %v896
        %924 = vmatpush.msra.mxu0 %v895
        %925 = vmatpush.msra.mxu0 %v894
        %926 = vmatmul.f32.gmra.mxu0 %v878
        %v927 = vpop.f32.mrf.mxu0
        %v928 = vadd.f32 0.0, %v927
        %929 = vmatmul.f32.gmra.mxu0 %v879
        %v930 = vpop.f32.mrf.mxu0
        %v931 = vadd.f32 0.0, %v930
        %932 = vmatmul.f32.gmra.mxu0 %v880
        %v933 = vpop.f32.mrf.mxu0
        %v934 = vadd.f32 0.0, %v933
        %935 = vmatmul.f32.gmra.mxu0 %v881
        %v936 = vpop.f32.mrf.mxu0
        %v937 = vadd.f32 0.0, %v936
        %938 = vmatmul.f32.gmra.mxu0 %v882
        %v939 = vpop.f32.mrf.mxu0
        %v940 = vadd.f32 0.0, %v939
        %941 = vmatmul.f32.gmra.mxu0 %v883
        %v942 = vpop.f32.mrf.mxu0
        %v943 = vadd.f32 0.0, %v942
        %944 = vmatmul.f32.gmra.mxu0 %v884
        %v945 = vpop.f32.mrf.mxu0
        %v946 = vadd.f32 0.0, %v945
        %947 = vmatmul.f32.gmra.mxu0 %v885
        %v948 = vpop.f32.mrf.mxu0
        %v949 = vadd.f32 0.0, %v948
        %950 = vmatmul.f32.gmra.mxu0 %v886
        %v951 = vpop.f32.mrf.mxu0
        %v952 = vadd.f32 0.0, %v951
        %953 = vmatmul.f32.gmra.mxu0 %v887
        %v954 = vpop.f32.mrf.mxu0
        %v955 = vadd.f32 0.0, %v954
        %956 = vmatmul.f32.gmra.mxu0 %v888
        %v957 = vpop.f32.mrf.mxu0
        %v958 = vadd.f32 0.0, %v957
        %959 = vmatmul.f32.gmra.mxu0 %v889
        %v960 = vpop.f32.mrf.mxu0
        %v961 = vadd.f32 0.0, %v960
        %962 = vmatmul.f32.gmra.mxu0 %v890
        %v963 = vpop.f32.mrf.mxu0
        %v964 = vadd.f32 0.0, %v963
        %965 = vmatmul.f32.gmra.mxu0 %v891
        %v966 = vpop.f32.mrf.mxu0
        %v967 = vadd.f32 0.0, %v966
        %968 = vmatmul.f32.gmra.mxu0 %v892
        %v969 = vpop.f32.mrf.mxu0
        %v970 = vadd.f32 0.0, %v969
        %971 = vmatmul.f32.gmra.mxu0 %v893
        %v972 = vpop.f32.mrf.mxu0
        %v973 = vadd.f32 0.0, %v972
        %974 = vdwg.mxu0
        %v975 = vld [vmem:[%s465] sm:$0x1]
        %v976 = vsub.f32 0.0, %v928
        %v977 = vsub.f32 0.0, %v931
        %v978 = vsub.f32 0.0, %v934
        %v979 = vsub.f32 0.0, %v937
        %v980 = vsub.f32 0.0, %v940
        %v981 = vsub.f32 0.0, %v943
        %v982 = vsub.f32 0.0, %v946
        %v983 = vsub.f32 0.0, %v949
        %v984 = vsub.f32 0.0, %v952
        %v985 = vsub.f32 0.0, %v955
        %v986 = vsub.f32 0.0, %v958
        %v987 = vsub.f32 0.0, %v961
        %v988 = vsub.f32 0.0, %v964
        %v989 = vsub.f32 0.0, %v967
        %v990 = vsub.f32 0.0, %v970
        %v991 = vsub.f32 0.0, %v973
        %v992 = vld [vmem:[%s403] sm:$0x1]
        %v994 = vperm.slane %v992, 0
        %v996 = vmul.f32 %v976, %v994
        %v997 = vmul.f32 %v977, %v994
        %v998 = vmul.f32 %v978, %v994
        %v999 = vmul.f32 %v979, %v994
        %v1000 = vmul.f32 %v980, %v994
        %v1001 = vmul.f32 %v981, %v994
        %v1002 = vmul.f32 %v982, %v994
        %v1003 = vmul.f32 %v983, %v994
        %v1004 = vmul.f32 %v984, %v994
        %v1005 = vmul.f32 %v985, %v994
        %v1006 = vmul.f32 %v986, %v994
        %v1007 = vmul.f32 %v987, %v994
        %v1008 = vmul.f32 %v988, %v994
        %v1009 = vmul.f32 %v989, %v994
        %v1010 = vmul.f32 %v990, %v994
        %v1011 = vmul.f32 %v991, %v994
        %v1012 = vand.u32 2147483647, %v928
        %v1013 = vand.u32 2147483647, %v931
        %v1014 = vand.u32 2147483647, %v934
        %v1015 = vand.u32 2147483647, %v937
        %v1016 = vand.u32 2147483647, %v940
        %v1017 = vand.u32 2147483647, %v943
        %v1018 = vand.u32 2147483647, %v946
        %v1019 = vand.u32 2147483647, %v949
        %v1020 = vand.u32 2147483647, %v952
        %v1021 = vand.u32 2147483647, %v955
        %v1022 = vand.u32 2147483647, %v958
        %v1023 = vand.u32 2147483647, %v961
        %v1024 = vand.u32 2147483647, %v964
        %v1025 = vand.u32 2147483647, %v967
        %v1026 = vand.u32 2147483647, %v970
        %v1027 = vand.u32 2147483647, %v973
        %v1028 = vmul.f32 %v1012, 0.1
        %v1029 = vmul.f32 %v1013, 0.1
        %v1030 = vmul.f32 %v1014, 0.1
        %v1031 = vmul.f32 %v1015, 0.1
        %v1032 = vmul.f32 %v1016, 0.1
        %v1033 = vmul.f32 %v1017, 0.1
        %v1034 = vmul.f32 %v1018, 0.1
        %v1035 = vmul.f32 %v1019, 0.1
        %v1036 = vmul.f32 %v1020, 0.1
        %v1037 = vmul.f32 %v1021, 0.1
        %v1038 = vmul.f32 %v1022, 0.1
        %v1039 = vmul.f32 %v1023, 0.1
        %v1040 = vmul.f32 %v1024, 0.1
        %v1041 = vmul.f32 %v1025, 0.1
        %v1042 = vmul.f32 %v1026, 0.1
        %v1043 = vmul.f32 %v1027, 0.1
        %v1044 = vsub.f32 %v996, %v1028
        %v1045 = vsub.f32 %v997, %v1029
        %v1046 = vsub.f32 %v998, %v1030
        %v1047 = vsub.f32 %v999, %v1031
        %v1048 = vsub.f32 %v1000, %v1032
        %v1049 = vsub.f32 %v1001, %v1033
        %v1050 = vsub.f32 %v1002, %v1034
        %v1051 = vsub.f32 %v1003, %v1035
        %v1052 = vsub.f32 %v1004, %v1036
        %v1053 = vsub.f32 %v1005, %v1037
        %v1054 = vsub.f32 %v1006, %v1038
        %v1055 = vsub.f32 %v1007, %v1039
        %v1056 = vsub.f32 %v1008, %v1040
        %v1057 = vsub.f32 %v1009, %v1041
        %v1058 = vsub.f32 %v1010, %v1042
        %v1059 = vsub.f32 %v1011, %v1043
        %1060 = vadd.xlane.f32.xlu0 %v1044
        %v1061 = vpop.xlane.xlu0 %1060
        %1062 = vadd.xlane.f32.xlu0 %v1045
        %v1063 = vpop.xlane.xlu0 %1062
        %1064 = vadd.xlane.f32.xlu0 %v1046
        %v1065 = vpop.xlane.xlu0 %1064
        %1066 = vadd.xlane.f32.xlu0 %v1047
        %v1067 = vpop.xlane.xlu0 %1066
        %1068 = vadd.xlane.f32.xlu0 %v1048
        %v1069 = vpop.xlane.xlu0 %1068
        %1070 = vadd.xlane.f32.xlu0 %v1049
        %v1071 = vpop.xlane.xlu0 %1070
        %1072 = vadd.xlane.f32.xlu0 %v1050
        %v1073 = vpop.xlane.xlu0 %1072
        %1074 = vadd.xlane.f32.xlu0 %v1051
        %v1075 = vpop.xlane.xlu0 %1074
        %1076 = vadd.xlane.f32.xlu0 %v1052
        %v1077 = vpop.xlane.xlu0 %1076
        %1078 = vadd.xlane.f32.xlu0 %v1053
        %v1079 = vpop.xlane.xlu0 %1078
        %1080 = vadd.xlane.f32.xlu0 %v1054
        %v1081 = vpop.xlane.xlu0 %1080
        %1082 = vadd.xlane.f32.xlu0 %v1055
        %v1083 = vpop.xlane.xlu0 %1082
        %1084 = vadd.xlane.f32.xlu0 %v1056
        %v1085 = vpop.xlane.xlu0 %1084
        %1086 = vadd.xlane.f32.xlu0 %v1057
        %v1087 = vpop.xlane.xlu0 %1086
        %1088 = vadd.xlane.f32.xlu0 %v1058
        %v1089 = vpop.xlane.xlu0 %1088
        %1090 = vadd.xlane.f32.xlu0 %v1059
        %v1091 = vpop.xlane.xlu0 %1090
        %v1108 = vperm.slane %v1061, 0
        %v1109 = vperm.slane %v1061, 1
        %v1110 = vperm.slane %v1061, 2
        %v1111 = vperm.slane %v1061, 3
        %v1112 = vperm.slane %v1061, 4
        %v1113 = vperm.slane %v1061, 5
        %v1114 = vperm.slane %v1061, 6
        %v1115 = vperm.slane %v1061, 7
        %v1116 = vperm.slane %v1063, 0
        %v1117 = vperm.slane %v1063, 1
        %v1118 = vperm.slane %v1063, 2
        %v1119 = vperm.slane %v1063, 3
        %v1120 = vperm.slane %v1063, 4
        %v1121 = vperm.slane %v1063, 5
        %v1122 = vperm.slane %v1063, 6
        %v1123 = vperm.slane %v1063, 7
        %v1124 = vperm.slane %v1065, 0
        %v1125 = vperm.slane %v1065, 1
        %v1126 = vperm.slane %v1065, 2
        %v1127 = vperm.slane %v1065, 3
        %v1128 = vperm.slane %v1065, 4
        %v1129 = vperm.slane %v1065, 5
        %v1130 = vperm.slane %v1065, 6
        %v1131 = vperm.slane %v1065, 7
        %v1132 = vperm.slane %v1067, 0
        %v1133 = vperm.slane %v1067, 1
        %v1134 = vperm.slane %v1067, 2
        %v1135 = vperm.slane %v1067, 3
        %v1136 = vperm.slane %v1067, 4
        %v1137 = vperm.slane %v1067, 5
        %v1138 = vperm.slane %v1067, 6
        %v1139 = vperm.slane %v1067, 7
        %v1140 = vperm.slane %v1069, 0
        %v1141 = vperm.slane %v1069, 1
        %v1142 = vperm.slane %v1069, 2
        %v1143 = vperm.slane %v1069, 3
        %v1144 = vperm.slane %v1069, 4
        %v1145 = vperm.slane %v1069, 5
        %v1146 = vperm.slane %v1069, 6
        %v1147 = vperm.slane %v1069, 7
        %v1148 = vperm.slane %v1071, 0
        %v1149 = vperm.slane %v1071, 1
        %v1150 = vperm.slane %v1071, 2
        %v1151 = vperm.slane %v1071, 3
        %v1152 = vperm.slane %v1071, 4
        %v1153 = vperm.slane %v1071, 5
        %v1154 = vperm.slane %v1071, 6
        %v1155 = vperm.slane %v1071, 7
        %v1156 = vperm.slane %v1073, 0
        %v1157 = vperm.slane %v1073, 1
        %v1158 = vperm.slane %v1073, 2
        %v1159 = vperm.slane %v1073, 3
        %v1160 = vperm.slane %v1073, 4
        %v1161 = vperm.slane %v1073, 5
        %v1162 = vperm.slane %v1073, 6
        %v1163 = vperm.slane %v1073, 7
        %v1164 = vperm.slane %v1075, 0
        %v1165 = vperm.slane %v1075, 1
        %v1166 = vperm.slane %v1075, 2
        %v1167 = vperm.slane %v1075, 3
        %v1168 = vperm.slane %v1075, 4
        %v1169 = vperm.slane %v1075, 5
        %v1170 = vperm.slane %v1075, 6
        %v1171 = vperm.slane %v1075, 7
        %v1172 = vperm.slane %v1077, 0
        %v1173 = vperm.slane %v1077, 1
        %v1174 = vperm.slane %v1077, 2
        %v1175 = vperm.slane %v1077, 3
        %v1176 = vperm.slane %v1077, 4
        %v1177 = vperm.slane %v1077, 5
        %v1178 = vperm.slane %v1077, 6
        %v1179 = vperm.slane %v1077, 7
        %v1180 = vperm.slane %v1079, 0
        %v1181 = vperm.slane %v1079, 1
        %v1182 = vperm.slane %v1079, 2
        %v1183 = vperm.slane %v1079, 3
        %v1184 = vperm.slane %v1079, 4
        %v1185 = vperm.slane %v1079, 5
        %v1186 = vperm.slane %v1079, 6
        %v1187 = vperm.slane %v1079, 7
        %v1188 = vperm.slane %v1081, 0
        %v1189 = vperm.slane %v1081, 1
        %v1190 = vperm.slane %v1081, 2
        %v1191 = vperm.slane %v1081, 3
        %v1192 = vperm.slane %v1081, 4
        %v1193 = vperm.slane %v1081, 5
        %v1194 = vperm.slane %v1081, 6
        %v1195 = vperm.slane %v1081, 7
        %v1196 = vperm.slane %v1083, 0
        %v1197 = vperm.slane %v1083, 1
        %v1198 = vperm.slane %v1083, 2
        %v1199 = vperm.slane %v1083, 3
        %v1200 = vperm.slane %v1083, 4
        %v1201 = vperm.slane %v1083, 5
        %v1202 = vperm.slane %v1083, 6
        %v1203 = vperm.slane %v1083, 7
        %v1204 = vperm.slane %v1085, 0
        %v1205 = vperm.slane %v1085, 1
        %v1206 = vperm.slane %v1085, 2
        %v1207 = vperm.slane %v1085, 3
        %v1208 = vperm.slane %v1085, 4
        %v1209 = vperm.slane %v1085, 5
        %v1210 = vperm.slane %v1085, 6
        %v1211 = vperm.slane %v1085, 7
        %v1212 = vperm.slane %v1087, 0
        %v1213 = vperm.slane %v1087, 1
        %v1214 = vperm.slane %v1087, 2
        %v1215 = vperm.slane %v1087, 3
        %v1216 = vperm.slane %v1087, 4
        %v1217 = vperm.slane %v1087, 5
        %v1218 = vperm.slane %v1087, 6
        %v1219 = vperm.slane %v1087, 7
        %v1220 = vperm.slane %v1089, 0
        %v1221 = vperm.slane %v1089, 1
        %v1222 = vperm.slane %v1089, 2
        %v1223 = vperm.slane %v1089, 3
        %v1224 = vperm.slane %v1089, 4
        %v1225 = vperm.slane %v1089, 5
        %v1226 = vperm.slane %v1089, 6
        %v1227 = vperm.slane %v1089, 7
        %v1228 = vperm.slane %v1091, 0
        %v1229 = vperm.slane %v1091, 1
        %v1230 = vperm.slane %v1091, 2
        %v1231 = vperm.slane %v1091, 3
        %v1232 = vperm.slane %v1091, 4
        %v1233 = vperm.slane %v1091, 5
        %v1234 = vperm.slane %v1091, 6
        %v1235 = vperm.slane %v1091, 7
        %1236 = vst [vmem:[#allocation1] ss:$9 sm:$0xff] %v1108
        %s1237 = scalar_lea.vmem [#allocation1], 1
        %1238 = vst [vmem:[%s1237] ss:$9 sm:$0xff] %v1109
        %s1239 = scalar_lea.vmem [#allocation1], 2
        %1240 = vst [vmem:[%s1239] ss:$9 sm:$0xff] %v1110
        %s1241 = scalar_lea.vmem [#allocation1], 3
        %1242 = vst [vmem:[%s1241] ss:$9 sm:$0xff] %v1111
        %s1243 = scalar_lea.vmem [#allocation1], 4
        %1244 = vst [vmem:[%s1243] ss:$9 sm:$0xff] %v1112
        %s1245 = scalar_lea.vmem [#allocation1], 5
        %1246 = vst [vmem:[%s1245] ss:$9 sm:$0xff] %v1113
        %s1247 = scalar_lea.vmem [#allocation1], 6
        %1248 = vst [vmem:[%s1247] ss:$9 sm:$0xff] %v1114
        %s1249 = scalar_lea.vmem [#allocation1], 7
        %1250 = vst [vmem:[%s1249] ss:$9 sm:$0xff] %v1115
        %v1251 = vld [vmem:[#allocation1] sm:$0xff]
        %1252 = vst [vmem:[#allocation1] ss:$9 sm:$0xff] %v1116
        %1253 = vst [vmem:[%s1237] ss:$9 sm:$0xff] %v1117
        %1254 = vst [vmem:[%s1239] ss:$9 sm:$0xff] %v1118
        %1255 = vst [vmem:[%s1241] ss:$9 sm:$0xff] %v1119
        %1256 = vst [vmem:[%s1243] ss:$9 sm:$0xff] %v1120
        %1257 = vst [vmem:[%s1245] ss:$9 sm:$0xff] %v1121
        %1258 = vst [vmem:[%s1247] ss:$9 sm:$0xff] %v1122
        %1259 = vst [vmem:[%s1249] ss:$9 sm:$0xff] %v1123
        %v1260 = vld [vmem:[#allocation1] sm:$0xff]
        %1261 = vst [vmem:[#allocation1] ss:$9 sm:$0xff] %v1124
        %1262 = vst [vmem:[%s1237] ss:$9 sm:$0xff] %v1125
        %1263 = vst [vmem:[%s1239] ss:$9 sm:$0xff] %v1126
        %1264 = vst [vmem:[%s1241] ss:$9 sm:$0xff] %v1127
        %1265 = vst [vmem:[%s1243] ss:$9 sm:$0xff] %v1128
        %1266 = vst [vmem:[%s1245] ss:$9 sm:$0xff] %v1129
        %1267 = vst [vmem:[%s1247] ss:$9 sm:$0xff] %v1130
        %1268 = vst [vmem:[%s1249] ss:$9 sm:$0xff] %v1131
        %v1269 = vld [vmem:[#allocation1] sm:$0xff]
        %1270 = vst [vmem:[#allocation1] ss:$9 sm:$0xff] %v1132
        %1271 = vst [vmem:[%s1237] ss:$9 sm:$0xff] %v1133
        %1272 = vst [vmem:[%s1239] ss:$9 sm:$0xff] %v1134
        %1273 = vst [vmem:[%s1241] ss:$9 sm:$0xff] %v1135
        %1274 = vst [vmem:[%s1243] ss:$9 sm:$0xff] %v1136
        %1275 = vst [vmem:[%s1245] ss:$9 sm:$0xff] %v1137
        %1276 = vst [vmem:[%s1247] ss:$9 sm:$0xff] %v1138
        %1277 = vst [vmem:[%s1249] ss:$9 sm:$0xff] %v1139
        %v1278 = vld [vmem:[#allocation1] sm:$0xff]
        %1279 = vst [vmem:[#allocation1] ss:$9 sm:$0xff] %v1140
        %1280 = vst [vmem:[%s1237] ss:$9 sm:$0xff] %v1141
        %1281 = vst [vmem:[%s1239] ss:$9 sm:$0xff] %v1142
        %1282 = vst [vmem:[%s1241] ss:$9 sm:$0xff] %v1143
        %1283 = vst [vmem:[%s1243] ss:$9 sm:$0xff] %v1144
        %1284 = vst [vmem:[%s1245] ss:$9 sm:$0xff] %v1145
        %1285 = vst [vmem:[%s1247] ss:$9 sm:$0xff] %v1146
        %1286 = vst [vmem:[%s1249] ss:$9 sm:$0xff] %v1147
        %v1287 = vld [vmem:[#allocation1] sm:$0xff]
        %1288 = vst [vmem:[#allocation1] ss:$9 sm:$0xff] %v1148
        %1289 = vst [vmem:[%s1237] ss:$9 sm:$0xff] %v1149
        %1290 = vst [vmem:[%s1239] ss:$9 sm:$0xff] %v1150
        %1291 = vst [vmem:[%s1241] ss:$9 sm:$0xff] %v1151
        %1292 = vst [vmem:[%s1243] ss:$9 sm:$0xff] %v1152
        %1293 = vst [vmem:[%s1245] ss:$9 sm:$0xff] %v1153
        %1294 = vst [vmem:[%s1247] ss:$9 sm:$0xff] %v1154
        %1295 = vst [vmem:[%s1249] ss:$9 sm:$0xff] %v1155
        %v1296 = vld [vmem:[#allocation1] sm:$0xff]
        %1297 = vst [vmem:[#allocation1] ss:$9 sm:$0xff] %v1156
        %1298 = vst [vmem:[%s1237] ss:$9 sm:$0xff] %v1157
        %1299 = vst [vmem:[%s1239] ss:$9 sm:$0xff] %v1158
        %1300 = vst [vmem:[%s1241] ss:$9 sm:$0xff] %v1159
        %1301 = vst [vmem:[%s1243] ss:$9 sm:$0xff] %v1160
        %1302 = vst [vmem:[%s1245] ss:$9 sm:$0xff] %v1161
        %1303 = vst [vmem:[%s1247] ss:$9 sm:$0xff] %v1162
        %1304 = vst [vmem:[%s1249] ss:$9 sm:$0xff] %v1163
        %v1305 = vld [vmem:[#allocation1] sm:$0xff]
        %1306 = vst [vmem:[#allocation1] ss:$9 sm:$0xff] %v1164
        %1307 = vst [vmem:[%s1237] ss:$9 sm:$0xff] %v1165
        %1308 = vst [vmem:[%s1239] ss:$9 sm:$0xff] %v1166
        %1309 = vst [vmem:[%s1241] ss:$9 sm:$0xff] %v1167
        %1310 = vst [vmem:[%s1243] ss:$9 sm:$0xff] %v1168
        %1311 = vst [vmem:[%s1245] ss:$9 sm:$0xff] %v1169
        %1312 = vst [vmem:[%s1247] ss:$9 sm:$0xff] %v1170
        %1313 = vst [vmem:[%s1249] ss:$9 sm:$0xff] %v1171
        %v1314 = vld [vmem:[#allocation1] sm:$0xff]
        %1315 = vst [vmem:[#allocation1] ss:$9 sm:$0xff] %v1172
        %1316 = vst [vmem:[%s1237] ss:$9 sm:$0xff] %v1173
        %1317 = vst [vmem:[%s1239] ss:$9 sm:$0xff] %v1174
        %1318 = vst [vmem:[%s1241] ss:$9 sm:$0xff] %v1175
        %1319 = vst [vmem:[%s1243] ss:$9 sm:$0xff] %v1176
        %1320 = vst [vmem:[%s1245] ss:$9 sm:$0xff] %v1177
        %1321 = vst [vmem:[%s1247] ss:$9 sm:$0xff] %v1178
        %1322 = vst [vmem:[%s1249] ss:$9 sm:$0xff] %v1179
        %v1323 = vld [vmem:[#allocation1] sm:$0xff]
        %1324 = vst [vmem:[#allocation1] ss:$9 sm:$0xff] %v1180
        %1325 = vst [vmem:[%s1237] ss:$9 sm:$0xff] %v1181
        %1326 = vst [vmem:[%s1239] ss:$9 sm:$0xff] %v1182
        %1327 = vst [vmem:[%s1241] ss:$9 sm:$0xff] %v1183
        %1328 = vst [vmem:[%s1243] ss:$9 sm:$0xff] %v1184
        %1329 = vst [vmem:[%s1245] ss:$9 sm:$0xff] %v1185
        %1330 = vst [vmem:[%s1247] ss:$9 sm:$0xff] %v1186
        %1331 = vst [vmem:[%s1249] ss:$9 sm:$0xff] %v1187
        %v1332 = vld [vmem:[#allocation1] sm:$0xff]
        %1333 = vst [vmem:[#allocation1] ss:$9 sm:$0xff] %v1188
        %1334 = vst [vmem:[%s1237] ss:$9 sm:$0xff] %v1189
        %1335 = vst [vmem:[%s1239] ss:$9 sm:$0xff] %v1190
        %1336 = vst [vmem:[%s1241] ss:$9 sm:$0xff] %v1191
        %1337 = vst [vmem:[%s1243] ss:$9 sm:$0xff] %v1192
        %1338 = vst [vmem:[%s1245] ss:$9 sm:$0xff] %v1193
        %1339 = vst [vmem:[%s1247] ss:$9 sm:$0xff] %v1194
        %1340 = vst [vmem:[%s1249] ss:$9 sm:$0xff] %v1195
        %v1341 = vld [vmem:[#allocation1] sm:$0xff]
        %1342 = vst [vmem:[#allocation1] ss:$9 sm:$0xff] %v1196
        %1343 = vst [vmem:[%s1237] ss:$9 sm:$0xff] %v1197
        %1344 = vst [vmem:[%s1239] ss:$9 sm:$0xff] %v1198
        %1345 = vst [vmem:[%s1241] ss:$9 sm:$0xff] %v1199
        %1346 = vst [vmem:[%s1243] ss:$9 sm:$0xff] %v1200
        %1347 = vst [vmem:[%s1245] ss:$9 sm:$0xff] %v1201
        %1348 = vst [vmem:[%s1247] ss:$9 sm:$0xff] %v1202
        %1349 = vst [vmem:[%s1249] ss:$9 sm:$0xff] %v1203
        %v1350 = vld [vmem:[#allocation1] sm:$0xff]
        %1351 = vst [vmem:[#allocation1] ss:$9 sm:$0xff] %v1204
        %1352 = vst [vmem:[%s1237] ss:$9 sm:$0xff] %v1205
        %1353 = vst [vmem:[%s1239] ss:$9 sm:$0xff] %v1206
        %1354 = vst [vmem:[%s1241] ss:$9 sm:$0xff] %v1207
        %1355 = vst [vmem:[%s1243] ss:$9 sm:$0xff] %v1208
        %1356 = vst [vmem:[%s1245] ss:$9 sm:$0xff] %v1209
        %1357 = vst [vmem:[%s1247] ss:$9 sm:$0xff] %v1210
        %1358 = vst [vmem:[%s1249] ss:$9 sm:$0xff] %v1211
        %v1359 = vld [vmem:[#allocation1] sm:$0xff]
        %1360 = vst [vmem:[#allocation1] ss:$9 sm:$0xff] %v1212
        %1361 = vst [vmem:[%s1237] ss:$9 sm:$0xff] %v1213
        %1362 = vst [vmem:[%s1239] ss:$9 sm:$0xff] %v1214
        %1363 = vst [vmem:[%s1241] ss:$9 sm:$0xff] %v1215
        %1364 = vst [vmem:[%s1243] ss:$9 sm:$0xff] %v1216
        %1365 = vst [vmem:[%s1245] ss:$9 sm:$0xff] %v1217
        %1366 = vst [vmem:[%s1247] ss:$9 sm:$0xff] %v1218
        %1367 = vst [vmem:[%s1249] ss:$9 sm:$0xff] %v1219
        %v1368 = vld [vmem:[#allocation1] sm:$0xff]
        %1369 = vst [vmem:[#allocation1] ss:$9 sm:$0xff] %v1220
        %1370 = vst [vmem:[%s1237] ss:$9 sm:$0xff] %v1221
        %1371 = vst [vmem:[%s1239] ss:$9 sm:$0xff] %v1222
        %1372 = vst [vmem:[%s1241] ss:$9 sm:$0xff] %v1223
        %1373 = vst [vmem:[%s1243] ss:$9 sm:$0xff] %v1224
        %1374 = vst [vmem:[%s1245] ss:$9 sm:$0xff] %v1225
        %1375 = vst [vmem:[%s1247] ss:$9 sm:$0xff] %v1226
        %1376 = vst [vmem:[%s1249] ss:$9 sm:$0xff] %v1227
        %v1377 = vld [vmem:[#allocation1] sm:$0xff]
        %1378 = vst [vmem:[#allocation1] ss:$9 sm:$0xff] %v1228
        %1379 = vst [vmem:[%s1237] ss:$9 sm:$0xff] %v1229
        %1380 = vst [vmem:[%s1239] ss:$9 sm:$0xff] %v1230
        %1381 = vst [vmem:[%s1241] ss:$9 sm:$0xff] %v1231
        %1382 = vst [vmem:[%s1243] ss:$9 sm:$0xff] %v1232
        %1383 = vst [vmem:[%s1245] ss:$9 sm:$0xff] %v1233
        %1384 = vst [vmem:[%s1247] ss:$9 sm:$0xff] %v1234
        %1385 = vst [vmem:[%s1249] ss:$9 sm:$0xff] %v1235
        %v1386 = vld [vmem:[#allocation1] sm:$0xff]
        %1387 = vset.pattern.permute.xlu0 0
        %1388 = vperm.xlu0 %1387, %v1251
        %v1389 = vpop.permute.xlu0 %1388
        %1390 = vset.pattern.permute.xlu0 0
        %1391 = vperm.xlu0 %1390, %v1260
        %v1392 = vpop.permute.xlu0 %1391
        %1393 = vset.pattern.permute.xlu0 0
        %1394 = vperm.xlu0 %1393, %v1269
        %v1395 = vpop.permute.xlu0 %1394
        %1396 = vset.pattern.permute.xlu0 0
        %1397 = vperm.xlu0 %1396, %v1278
        %v1398 = vpop.permute.xlu0 %1397
        %1399 = vset.pattern.permute.xlu0 0
        %1400 = vperm.xlu0 %1399, %v1287
        %v1401 = vpop.permute.xlu0 %1400
        %1402 = vset.pattern.permute.xlu0 0
        %1403 = vperm.xlu0 %1402, %v1296
        %v1404 = vpop.permute.xlu0 %1403
        %1405 = vset.pattern.permute.xlu0 0
        %1406 = vperm.xlu0 %1405, %v1305
        %v1407 = vpop.permute.xlu0 %1406
        %1408 = vset.pattern.permute.xlu0 0
        %1409 = vperm.xlu0 %1408, %v1314
        %v1410 = vpop.permute.xlu0 %1409
        %1411 = vset.pattern.permute.xlu0 0
        %1412 = vperm.xlu0 %1411, %v1323
        %v1413 = vpop.permute.xlu0 %1412
        %1414 = vset.pattern.permute.xlu0 0
        %1415 = vperm.xlu0 %1414, %v1332
        %v1416 = vpop.permute.xlu0 %1415
        %1417 = vset.pattern.permute.xlu0 0
        %1418 = vperm.xlu0 %1417, %v1341
        %v1419 = vpop.permute.xlu0 %1418
        %1420 = vset.pattern.permute.xlu0 0
        %1421 = vperm.xlu0 %1420, %v1350
        %v1422 = vpop.permute.xlu0 %1421
        %1423 = vset.pattern.permute.xlu0 0
        %1424 = vperm.xlu0 %1423, %v1359
        %v1425 = vpop.permute.xlu0 %1424
        %1426 = vset.pattern.permute.xlu0 0
        %1427 = vperm.xlu0 %1426, %v1368
        %v1428 = vpop.permute.xlu0 %1427
        %1429 = vset.pattern.permute.xlu0 0
        %1430 = vperm.xlu0 %1429, %v1377
        %v1431 = vpop.permute.xlu0 %1430
        %1432 = vset.pattern.permute.xlu0 0
        %1433 = vperm.xlu0 %1432, %v1386
        %v1434 = vpop.permute.xlu0 %1433
        %v1435 = vlaneseq
        %v1436 = vand.u32 %v1435, 127
        %v1437 = vperm.slane %v1389, %v1436
        %v1438 = vadd.s32 %v1436, 4294967288
        %v1439 = vperm.slane %v1392, %v1438
        %vm1440 = vcmask 130112
        %v1441 = vsel %vm1440, %v1439, %v1437
        %v1442 = vadd.s32 %v1436, 4294967280
        %v1443 = vperm.slane %v1395, %v1442
        %vm1444 = vcmask 195712
        %v1445 = vsel %vm1444, %v1443, %v1441
        %v1446 = vadd.s32 %v1436, 4294967272
        %v1447 = vperm.slane %v1398, %v1446
        %vm1448 = vcmask 261312
        %v1449 = vsel %vm1448, %v1447, %v1445
        %v1450 = vadd.s32 %v1436, 4294967264
        %v1451 = vperm.slane %v1401, %v1450
        %vm1452 = vcmask 326912
        %v1453 = vsel %vm1452, %v1451, %v1449
        %v1454 = vadd.s32 %v1436, 4294967256
        %v1455 = vperm.slane %v1404, %v1454
        %vm1456 = vcmask 392512
        %v1457 = vsel %vm1456, %v1455, %v1453
        %v1458 = vadd.s32 %v1436, 4294967248
        %v1459 = vperm.slane %v1407, %v1458
        %vm1460 = vcmask 458112
        %v1461 = vsel %vm1460, %v1459, %v1457
        %v1462 = vadd.s32 %v1436, 4294967240
        %v1463 = vperm.slane %v1410, %v1462
        %vm1464 = vcmask 523712
        %v1465 = vsel %vm1464, %v1463, %v1461
        %v1466 = vadd.s32 %v1436, 4294967232
        %v1467 = vperm.slane %v1413, %v1466
        %vm1468 = vcmask 589312
        %v1469 = vsel %vm1468, %v1467, %v1465
        %v1470 = vadd.s32 %v1436, 4294967224
        %v1471 = vperm.slane %v1416, %v1470
        %vm1472 = vcmask 654912
        %v1473 = vsel %vm1472, %v1471, %v1469
        %v1474 = vadd.s32 %v1436, 4294967216
        %v1475 = vperm.slane %v1419, %v1474
        %vm1476 = vcmask 720512
        %v1477 = vsel %vm1476, %v1475, %v1473
        %v1478 = vadd.s32 %v1436, 4294967208
        %v1479 = vperm.slane %v1422, %v1478
        %vm1480 = vcmask 786112
        %v1481 = vsel %vm1480, %v1479, %v1477
        %v1482 = vadd.s32 %v1436, 4294967200
        %v1483 = vperm.slane %v1425, %v1482
        %vm1484 = vcmask 851712
        %v1485 = vsel %vm1484, %v1483, %v1481
        %v1486 = vadd.s32 %v1436, 4294967192
        %v1487 = vperm.slane %v1428, %v1486
        %vm1488 = vcmask 917312
        %v1489 = vsel %vm1488, %v1487, %v1485
        %v1490 = vadd.s32 %v1436, 4294967184
        %v1491 = vperm.slane %v1431, %v1490
        %vm1492 = vcmask 982912
        %v1493 = vsel %vm1492, %v1491, %v1489
        %v1494 = vadd.s32 %v1436, 4294967176
        %v1495 = vperm.slane %v1434, %v1494
        %vm1496 = vcmask 1048512
        %v1497 = vsel %vm1496, %v1495, %v1493
        %v1499 = vadd.f32 %v975, %v1497
        %1500 = vst [vmem:[%s465] sm:$0x1] %v1499
        %s1501 = sand.u32 %s245, 1
        %s1502 = scalar_lea.sflag [#allocation5], %s1501
        %s1503 = sand.u32 %s245, 1
        %s1504 = scalar_lea.vmem [#allocation14], %s1503
        // Predicated region
        $region81: #{tpu_custom_call.1} parent=51 // pred_check
          %p1505 = pneg %p255
        $region82: #{tpu_custom_call.1} parent=51 // pred_check_branch
          %1507 = sbr.rel (%p1505) target = $region84
        $region83: #{tpu_custom_call.1} parent=51 // pred_region
          %1509 = vsyncadd %s1502, 0
          %s1510 = scalar_lea.hbm %s8, %s34
          %s1512 = sshll.u32 %s1504, 4
          %s1513 = int_to_ptr.vmem [resolvable:$true] %s1512
          %s1514 = sshll.u32 %s1510, 4
          %s1515 = int_to_ptr.hbm [resolvable:$true] %s1514
          %1517 = dma.vmem_to_hbm [thread:$0]  %s1513, 16, %s1515, %s1502
        $region84: #{tpu_custom_call.1} parent=51 // pred_fallthru
          _
      $region52: #{tpu_custom_call.1} parent=5 // pred_fallthru
        _
      %p1518 = scmp.le.s32.totalorder 2, %s25
      // Predicated region
      $region85: #{tpu_custom_call.1} parent=5 // pred_check
        %p1519 = pneg %p1518
      $region86: #{tpu_custom_call.1} parent=5 // pred_check_branch
        %1521 = sbr.rel (%p1519) target = $region88
      $region87: #{tpu_custom_call.1} parent=5 // pred_region
        %s1522 = ssub.s32 %s25, 2
        // Predicated region
        $region89: #{tpu_custom_call.1} parent=87 // pred_check
          %p1523 = pneg %p261
        $region90: #{tpu_custom_call.1} parent=87 // pred_check_branch
          %1525 = sbr.rel (%p1523) target = $region92
        $region91: #{tpu_custom_call.1} parent=87 // pred_region
          %s1526 = sand.u32 %s246, 1
          %s1527 = scalar_lea.sflag [#allocation5], %s1526
          %s1528 = sand.u32 %s246, 1
          %s1529 = scalar_lea.vmem [#allocation14], %s1528
          %1531 = dma.done %s1527, 16
        $region92: #{tpu_custom_call.1} parent=87 // pred_fallthru
          _
      $region88: #{tpu_custom_call.1} parent=5 // pred_fallthru
        _
    $region6: #{tpu_custom_call.1} parent=1 // loop_footer
      %s29 = sadd.s32 1, %s25
    $region7: #{tpu_custom_call.1} parent=1 // loop_footer_branch
      %24 = sbr.rel target = $region3
    $region8: #{tpu_custom_call.1} parent=1 // loop_exit
      _
    %1532 = vsyncpa [#allocation4], 1
    %s1533 = scalar_lea.sflag [#allocation4], 1
    %1534 = vsyncpa %s1533, 1
    %1535 = vsyncpa [#allocation7], 1
    %s1536 = scalar_lea.sflag [#allocation7], 1
    %1537 = vsyncpa %s1536, 1
    %1538 = vsyncpa [#allocation10], 1
    %1539 = vsyncpa [#allocation13], 1
    %1540 = vsyncpa [#allocation5], 1
    %s1541 = scalar_lea.sflag [#allocation5], 1
    %1542 = vsyncpa %s1541, 1

</llo_original>
